<compile_context>
chip_gen: v6e
topology: v6e:2x2x1
jax: 0.10.0
libtpu: 0.0.40
codegen_flags: <defaults>
</compile_context>

<pallas_src>
import jax
import jax.numpy as jnp
from jax.experimental import pallas as pl
from jax.experimental.pallas import tpu as pltpu


_FUSED_SLAB_LIMIT = 4 * 1024 * 1024   # bytes of one (C, HW) f32 slab for the fused path
_TILE_BUDGET = 2 * 1024 * 1024        # target bytes per streamed tile in the fallback
_VMEM_LIMIT = 32 * 1024 * 1024        # explicit scoped-VMEM limit (safe on v5e/v6e/v7x)


# ---------------------------------------------------------------------------
# Fused single-pass kernel: reduce + MLP + sigmoid + scale, one batch per step.
# ---------------------------------------------------------------------------
def _make_fused_kernel(hw, c):
    inv_hw = 1.0 / float(hw)
    lane_partial = (hw % 128 == 0) and (hw >= 256)

    def kernel(x_ref, w1_ref, w2_ref, o_ref):
        # x_ref : (1, C, HW) f32 ; w1_ref: (Chid, C) ; w2_ref: (C, Chid)
        x = x_ref[0]                                                    # (C, HW)
        if lane_partial:
            # VPU-friendly: reduce the middle axis first, one XLU cross-lane reduce at the end.
            xr = x.reshape(c, hw // 128, 128)
            s = jnp.sum(jnp.sum(xr, axis=1), axis=-1, keepdims=True)    # (C, 1)
            mx = jnp.max(jnp.max(xr, axis=1), axis=-1, keepdims=True)   # (C, 1)
        else:
            s = jnp.sum(x, axis=-1, keepdims=True)
            mx = jnp.max(x, axis=-1, keepdims=True)
        avg = s * inv_hw
        # Both pooled vectors as columns of one (C, 2) matrix -> one pair of matmuls.
        # (Tiny MXU shapes; cost is negligible per the review, so kept on the MXU.)
        pooled = jnp.concatenate([avg, mx], axis=-1)                    # (C, 2)
        h = jnp.maximum(
            jnp.dot(w1_ref[...], pooled, preferred_element_type=jnp.float32), 0.0)
        y = jnp.dot(w2_ref[...], h, preferred_element_type=jnp.float32)  # (C, 2)
        att = jax.nn.sigmoid(y[:, 0:1] + y[:, 1:2])                     # (C, 1)
        o_ref[0] = x * att

    return kernel


# ---------------------------------------------------------------------------
# Fallback pass 1: tiled spatial reduction (+ MLP/sigmoid on the last tile).
# ---------------------------------------------------------------------------
def _make_reduce_mlp_kernel(hw_total, tile, c, need_mask):
    inv_hw = 1.0 / float(hw_total)
    lane_partial = (tile % 128 == 0)

    def kernel(x_ref, w1_ref, w2_ref, att_ref, sum_acc, max_acc):
        # x_ref: (1, C, T) ; sum_acc / max_acc: (C, 128) f32 lane-resident partials.
        k = pl.program_id(1)
        nk = pl.num_programs(1)

        @pl.when(k == 0)
        def _init():
            sum_acc[...] = jnp.zeros_like(sum_acc)
            max_acc[...] = jnp.full_like(max_acc, -jnp.inf)

        x = x_ref[0]                                                    # (C, T)
        if lane_partial:
            nchunk = tile // 128
            xr = x.reshape(c, nchunk, 128)
            if need_mask:
                # Last grid block may extend past HW: mask padded lanes (0 for sum, -inf for max).
                idx = (jax.lax.broadcasted_iota(jnp.int32, (nchunk, 128), 0) * 128
                       + jax.lax.broadcasted_iota(jnp.int32, (nchunk, 128), 1))
                valid = ((k * tile + idx) < hw_total)[None, :, :]
                xs = jnp.where(valid, xr, 0.0)
                xm = jnp.where(valid, xr, -jnp.inf)
            else:
                xs = xr
                xm = xr
            sum_acc[...] += jnp.sum(xs, axis=1)                         # VPU adds -> (C, 128)
            max_acc[...] = jnp.maximum(max_acc[...], jnp.max(xm, axis=1))
        else:
            # Tiny spatial extent (< 128): direct reduce into lane 0.
            sum_acc[:, 0:1] += jnp.sum(x, axis=-1, keepdims=True)
            max_acc[:, 0:1] = jnp.maximum(max_acc[:, 0:1],
                                          jnp.max(x, axis=-1, keepdims=True))

        @pl.when(k == nk - 1)
        def _finalize():
            avg = jnp.sum(sum_acc[...], axis=-1, keepdims=True) * inv_hw   # (C, 1)
            mx = jnp.max(max_acc[...], axis=-1, keepdims=True)             # (C, 1)
            pooled = jnp.concatenate([avg, mx], axis=-1)                   # (C, 2)
            h = jnp.maximum(
                jnp.dot(w1_ref[...], pooled, preferred_element_type=jnp.float32), 0.0)
            y = jnp.dot(w2_ref[...], h, preferred_element_type=jnp.float32)
            att_ref[0] = jax.nn.sigmoid(y[:, 0:1] + y[:, 1:2])

    return kernel


# ---------------------------------------------------------------------------
# Fallback pass 2: streaming scale on (B*C, HW) rows.
# ---------------------------------------------------------------------------
def _scale_kernel(att_ref, x_ref, o_ref):
    # att_ref: (TR, 1) ; x_ref / o_ref: (TR, T)
    o_ref[...] = x_ref[...] * att_ref[...]


# ---------------------------------------------------------------------------
# Tile selection
# ---------------------------------------------------------------------------
def _pick_reduce_tile(hw, c):
    """Lane-dense (multiple-of-128) spatial tile of roughly _TILE_BUDGET bytes."""
    if hw < 128:
        return hw
    max_elems = max(128, _TILE_BUDGET // (4 * c))
    cands = [t for t in (16384, 8192, 4096, 2048, 1024, 512, 384, 256, 128)
             if t <= min(hw, max_elems)]
    for t in cands:                       # prefer a tile that divides HW (no masking)
        if hw % t == 0:
            return t
    return cands[0]                       # largest allowed; last block gets masked


def _pick_scale_tiles(r, hw):
    """(row_tile, col_tile) for the flattened (B*C, HW) scale pass."""
    if hw < 128:
        t = hw
    else:
        cands = [x for x in (8192, 4096, 2048, 1024, 512, 256, 128) if x <= hw]
        t = next((x for x in cands if hw % x == 0), cands[0])
    if r % 8 == 0:
        tr = max(8, min(r, (_TILE_BUDGET // (4 * t)) // 8 * 8))
    else:
        tr = r                            # full rows (allowed: equals the array dim)
    return tr, t


# ---------------------------------------------------------------------------
# Wrapper
# ---------------------------------------------------------------------------
def senet_pallas(x, w1, w2, *, force_two_pass=False, donate_input=False):
    """x: (B, C, H, W) f32; w1: (Chid, C), w2: (C, Chid) in PyTorch Linear layout."""
    b, c, h, w = x.shape
    hw = h * w
    x3 = x.reshape(b, c, hw).astype(jnp.float32)
    w1 = jnp.asarray(w1, jnp.float32)
    w2 = jnp.asarray(w2, jnp.float32)
    chid = w1.shape[0]
    slab_bytes = c * hw * 4

    # ---------------- fused single-pass path (one HBM read + one write of x) --------------
    if slab_bytes <= _FUSED_SLAB_LIMIT and not force_two_pass:
        out3 = pl.pallas_call(
            _make_fused_kernel(hw, c),
            out_shape=jax.ShapeDtypeStruct((b, c, hw), jnp.float32),
            grid=(b,),
            in_specs=[
                pl.BlockSpec((1, c, hw), lambda i: (i, 0, 0)),
                pl.BlockSpec((chid, c), lambda i: (0, 0)),
                pl.BlockSpec((c, chid), lambda i: (0, 0)),
            ],
            out_specs=pl.BlockSpec((1, c, hw), lambda i: (i, 0, 0)),
            input_output_aliases=({0: 0} if donate_input else {}),
            compiler_params=pltpu.CompilerParams(
                dimension_semantics=("parallel",),
                vmem_limit_bytes=_VMEM_LIMIT,
            ),
        )(x3, w1, w2)
        return out3.reshape(b, c, h, w)

    # ---------------- two-pass fallback for large slabs -----------------------------------
    # Pass 1: pooled reductions + fused MLP + sigmoid -> att (B, C, 1)
    t1 = _pick_reduce_tile(hw, c)
    n1 = pl.cdiv(hw, t1)
    att = pl.pallas_call(
        _make_reduce_mlp_kernel(hw, t1, c, need_mask=(hw % t1 != 0)),
        out_shape=jax.ShapeDtypeStruct((b, c, 1), jnp.float32),
        grid=(b, n1),
        in_specs=[
            pl.BlockSpec((1, c, t1), lambda i, k: (i, 0, k)),
            pl.BlockSpec((chid, c), lambda i, k: (0, 0)),
            pl.BlockSpec((c, chid), lambda i, k: (0, 0)),
        ],
        out_specs=pl.BlockSpec((1, c, 1), lambda i, k: (i, 0, 0)),
        scratch_shapes=[
            pltpu.VMEM((c, 128), jnp.float32),   # lane-resident running sum
            pltpu.VMEM((c, 128), jnp.float32),   # lane-resident running max
        ],
        compiler_params=pltpu.CompilerParams(
            dimension_semantics=("parallel", "arbitrary"),
            vmem_limit_bytes=_VMEM_LIMIT,
        ),
    )(x3, w1, w2)

    # Pass 2: out = x * att on flattened (B*C, HW) rows, fully parallel & pipelined.
    r = b * c
    x_flat = x3.reshape(r, hw)
    att_flat = att.reshape(r, 1)
    tr, t2 = _pick_scale_tiles(r, hw)
    out_flat = pl.pallas_call(
        _scale_kernel,
        out_shape=jax.ShapeDtypeStruct((r, hw), jnp.float32),
        grid=(pl.cdiv(r, tr), pl.cdiv(hw, t2)),
        in_specs=[
            pl.BlockSpec((tr, 1), lambda i, j: (i, 0)),
            pl.BlockSpec((tr, t2), lambda i, j: (i, j)),
        ],
        out_specs=pl.BlockSpec((tr, t2), lambda i, j: (i, j)),
        input_output_aliases=({1: 0} if donate_input else {}),
        compiler_params=pltpu.CompilerParams(
            dimension_semantics=("parallel", "parallel"),
            vmem_limit_bytes=_VMEM_LIMIT,
        ),
    )(att_flat, x_flat)
    return out_flat.reshape(b, c, h, w)


# ---------------------------------------------------------------------------
# Plain-JAX reference matching the PyTorch forward.
# ---------------------------------------------------------------------------
def senet_reference(x, w1, w2):
    avg = jnp.mean(x, axis=(2, 3))            # (B, C)
    mx = jnp.max(x, axis=(2, 3))              # (B, C)

    def mlp(v):
        return jnp.maximum(v @ w1.T, 0.0) @ w2.T

    att = jax.nn.sigmoid(mlp(avg) + mlp(mx))  # (B, C)
    return x * att[:, :, None, None]


if __name__ == "__main__":
    # Module config (PyTorch defaults): input_channels=64, ratio=16 -> hidden=4
    B, C, H, W = 2, 64, 32, 32
    RATIO = 16
    CH = C // RATIO

    key = jax.random.PRNGKey(0)
    kx, k1, k2, kx2 = jax.random.split(key, 4)

    x = jax.random.normal(kx, (B, C, H, W), dtype=jnp.float32)
    # PyTorch Linear layout: (out_features, in_features), bias-free.
    w1 = jax.random.normal(k1, (CH, C), dtype=jnp.float32) * (1.0 / jnp.sqrt(C))
    w2 = jax.random.normal(k2, (C, CH), dtype=jnp.float32) * (1.0 / jnp.sqrt(CH))

    # 1) Default fused single-pass path.
    out = jax.block_until_ready(senet_pallas(x, w1, w2))
    ref = senet_reference(x, w1, w2)
    assert out.shape == (B, C, H, W)
    assert jnp.allclose(out, ref, atol=2e-5, rtol=2e-5), "fused path mismatch vs reference"

    # 2) Fused path with a spatial extent that is NOT a multiple of 128.
    x_odd = jax.random.normal(kx2, (B, C, 10, 10), dtype=jnp.float32)
    out_odd = jax.block_until_ready(senet_pallas(x_odd, w1, w2))
    ref_odd = senet_reference(x_odd, w1, w2)
    assert jnp.allclose(out_odd, ref_odd, atol=2e-5, rtol=2e-5), "odd-HW mismatch vs reference"

    # 3) Large-slab two-pass fallback (forced here at a small shape so it stays fast).
    out_2p = jax.block_until_ready(senet_pallas(x, w1, w2, force_two_pass=True))
    assert jnp.allclose(out_2p, ref, atol=2e-5, rtol=2e-5), "two-pass path mismatch vs reference"

    print("KERNEL_OK")
</pallas_src>

<mosaic_0001>
module attributes {stable_mosaic.version = 11 : i64} {
  func.func @kernel(%arg0: i32, %arg1: memref<1x64x1024xf32, #tpu.memory_space<vmem>>, %arg2: memref<4x64xf32, #tpu.memory_space<vmem>>, %arg3: memref<64x4xf32, #tpu.memory_space<vmem>>, %arg4: memref<1x64x1024xf32, #tpu.memory_space<vmem>>) attributes {dimension_semantics = [#tpu.dimension_semantics<parallel>], iteration_bounds = array<i64: 2>, scalar_prefetch = 0 : i64, scratch_operands = 0 : i64, tpu.core_type = #tpu.core_type<tc>, window_params = [{transform_indices = @transform_0, window_bounds = array<i64: 1, 64, 1024>}, {pipeline_mode = #tpu.pipeline_mode<synchronous>, transform_indices = @transform_1, window_bounds = array<i64: 4, 64>}, {pipeline_mode = #tpu.pipeline_mode<synchronous>, transform_indices = @transform_2, window_bounds = array<i64: 64, 4>}, {transform_indices = @transform_3, window_bounds = array<i64: 1, 64, 1024>}]} {
    %c0 = arith.constant 0 : index
    %c0_0 = arith.constant 0 : index
    %c0_1 = arith.constant 0 : index
    %0 = vector.load %arg1[%c0, %c0_0, %c0_1] : memref<1x64x1024xf32, #tpu.memory_space<vmem>>, vector<1x64x1024xf32>
    %1 = vector.shape_cast %0 : vector<1x64x1024xf32> to vector<64x1024xf32>
    %2 = vector.shape_cast %1 : vector<64x1024xf32> to vector<64x8x128xf32>
    %cst = arith.constant dense<0.000000e+00> : vector<64x128xf32>
    %3 = vector.multi_reduction <add>, %2, %cst [1] : vector<64x8x128xf32> to vector<64x128xf32>
    %cst_2 = arith.constant dense<0.000000e+00> : vector<64xf32>
    %4 = vector.multi_reduction <add>, %3, %cst_2 [1] : vector<64x128xf32> to vector<64xf32>
    %5 = vector.shape_cast %4 : vector<64xf32> to vector<64x1xf32>
    %cst_3 = arith.constant dense<0xFF800000> : vector<64x128xf32>
    %6 = vector.multi_reduction <maximumf>, %2, %cst_3 [1] : vector<64x8x128xf32> to vector<64x128xf32>
    %cst_4 = arith.constant dense<0xFF800000> : vector<64xf32>
    %7 = vector.multi_reduction <maximumf>, %6, %cst_4 [1] : vector<64x128xf32> to vector<64xf32>
    %8 = vector.shape_cast %7 : vector<64xf32> to vector<64x1xf32>
    %cst_5 = arith.constant 9.765625E-4 : f32
    %9 = vector.broadcast %cst_5 : f32 to vector<64x1xf32>
    %10 = arith.mulf %5, %9 : vector<64x1xf32>
    %11 = tpu.concatenate %10, %8 in 1 : vector<64x1xf32>, vector<64x1xf32> -> vector<64x2xf32>
    %c0_6 = arith.constant 0 : index
    %c0_7 = arith.constant 0 : index
    %12 = vector.load %arg2[%c0_6, %c0_7] : memref<4x64xf32, #tpu.memory_space<vmem>>, vector<4x64xf32>
    %cst_8 = arith.constant dense<0.000000e+00> : vector<4x2xf32>
    %13 = tpu.matmul %12, %11, %cst_8 {dimension_numbers = #tpu.dot_dimension_numbers<[1], [0], [0], [1], [0, 0, 1, 1], [], []>} : vector<4x64xf32>, vector<64x2xf32>, vector<4x2xf32> -> vector<4x2xf32>
    %cst_9 = arith.constant 0.000000e+00 : f32
    %14 = vector.broadcast %cst_9 : f32 to vector<4x2xf32>
    %15 = arith.maximumf %13, %14 : vector<4x2xf32>
    %c0_10 = arith.constant 0 : index
    %c0_11 = arith.constant 0 : index
    %16 = vector.load %arg3[%c0_10, %c0_11] : memref<64x4xf32, #tpu.memory_space<vmem>>, vector<64x4xf32>
    %cst_12 = arith.constant dense<0.000000e+00> : vector<64x2xf32>
    %17 = tpu.matmul %16, %15, %cst_12 {dimension_numbers = #tpu.dot_dimension_numbers<[1], [0], [0], [1], [0, 0, 1, 1], [], []>} : vector<64x4xf32>, vector<4x2xf32>, vector<64x2xf32> -> vector<64x2xf32>
    %18 = vector.extract_strided_slice %17 {offsets = [0, 0], sizes = [64, 1], strides = [1, 1]} : vector<64x2xf32> to vector<64x1xf32>
    %19 = vector.extract_strided_slice %17 {offsets = [0, 1], sizes = [64, 1], strides = [1, 1]} : vector<64x2xf32> to vector<64x1xf32>
    %20 = arith.addf %18, %19 : vector<64x1xf32>
    %21 = arith.negf %20 : vector<64x1xf32>
    %22 = math.exp %21 : vector<64x1xf32>
    %cst_13 = arith.constant 1.000000e+00 : f32
    %23 = vector.broadcast %cst_13 : f32 to vector<64x1xf32>
    %24 = arith.addf %23, %22 : vector<64x1xf32>
    %25 = arith.divf %23, %24 : vector<64x1xf32>
    %26 = vector.broadcast %25 : vector<64x1xf32> to vector<64x1024xf32>
    %27 = arith.mulf %1, %26 : vector<64x1024xf32>
    %c0_14 = arith.constant 0 : index
    %c0_15 = arith.constant 0 : index
    %c0_16 = arith.constant 0 : index
    %28 = vector.load %arg4[%c0_14, %c0_15, %c0_16] : memref<1x64x1024xf32, #tpu.memory_space<vmem>>, vector<1x64x1024xf32>
    %29 = vector.shape_cast %28 : vector<1x64x1024xf32> to vector<64x1024xf32>
    %30 = vector.shape_cast %27 : vector<64x1024xf32> to vector<1x64x1024xf32>
    tpu.vector_store %arg4[%c0_14, %c0_15, %c0_16], %30 {strides = array<i32>} : memref<1x64x1024xf32, #tpu.memory_space<vmem>>, vector<1x64x1024xf32>,
    return
  }
  func.func @transform_0(%arg0: i32) -> (i32, i32, i32) {
    %c0_i32 = arith.constant 0 : i32
    %c0_i32_0 = arith.constant 0 : i32
    %c0_i32_1 = arith.constant 0 : i32
    return %arg0, %c0_i32, %c0_i32_0 : i32, i32, i32
  }
  func.func @transform_1(%arg0: i32) -> (i32, i32) {
    %c0_i32 = arith.constant 0 : i32
    %c0_i32_0 = arith.constant 0 : i32
    %c0_i32_1 = arith.constant 0 : i32
    return %c0_i32, %c0_i32_0 : i32, i32
  }
  func.func @transform_2(%arg0: i32) -> (i32, i32) {
    %c0_i32 = arith.constant 0 : i32
    %c0_i32_0 = arith.constant 0 : i32
    %c0_i32_1 = arith.constant 0 : i32
    return %c0_i32, %c0_i32_0 : i32, i32
  }
  func.func @transform_3(%arg0: i32) -> (i32, i32, i32) {
    %c0_i32 = arith.constant 0 : i32
    %c0_i32_0 = arith.constant 0 : i32
    %c0_i32_1 = arith.constant 0 : i32
    return %arg0, %c0_i32, %c0_i32_0 : i32, i32, i32
  }
}

</mosaic_0001>

<llo_original>
// kernel: tpu_custom_call.1
$region0: #{tpu_custom_call.1}
  #allocation0 [shape = 'u32[]', space=smem, size = 0x4, offset = 0x4, fixed_abs, tag = 'smem constant byte address 0x4 - core index']
  #allocation1 [shape = 'u32[144,128]{1,0:T(1,128)}', space=vmem, size = 0x12000, scoped, tag = 'internal scratch']
  %s0 = inlined_call_operand.hbm [shape: f32[2,64,1024], index: 0, kind: input, shape index: {}]
  %s1 = inlined_call_operand.vmem [shape: f32[4,64], index: 1, kind: input, shape index: {}]
  %s2 = inlined_call_operand.vmem [shape: f32[64,4], index: 2, kind: input, shape index: {}]
  %s3 = inlined_call_operand.hbm [shape: f32[2,64,1024], index: 3, kind: output, shape index: {}]
  %s4 = sld [smem:[#allocation0]]
  $region49: #{tpu_custom_call.1} parent=0
    _
  %s6 = ssub.s32 1, %s4
  %s7 = scalar_select 0, %s6, %s4
  $region1: #{tpu_custom_call.1} parent=0
    #allocation2 [shape = 'u8[524288]{0}', space=vmem, size = 0x80000, scoped, tag = 'input window, operand 0']
    #allocation3 [shape = 's32[2]{0}', space=sflag, size = 0x8, scoped, tag = 'scoped memory for tpu_custom_call.1']
    #allocation4 [shape = 's32[2]{0}', space=sflag, size = 0x8, scoped, tag = 'scoped memory for tpu_custom_call.1']
    #allocation5 [shape = 'u8[524288]{0}', space=vmem, size = 0x80000, scoped, tag = 'output window, operand 0']
    %8 = vsyncpa [#allocation3], 0
    %s9 = scalar_lea.sflag [#allocation3], 1
    %10 = vsyncpa %s9, 0
    %11 = vsyncpa [#allocation4], 0
    %s12 = scalar_lea.sflag [#allocation4], 1
    %13 = vsyncpa %s12, 0
    loop: start=0, step=1, limit=4
    $region2: #{tpu_custom_call.1} parent=1 // loop_pre_header
      _
    $region3: #{tpu_custom_call.1} parent=1 // loop_header
      %s15 = sphi 0, %s19
      %p16 = scmp.ge.s32.totalorder %s15, 4
      %s25 = sphi 0, %s27
      %s28 = sphi 0, %s25
      %s29 = sphi 0, %s28
      %s45 = sphi 0, %s29
      %s49 = sphi 0, %s49
      %s51 = sphi 0, %s49
      %s52 = sphi 0, %s51
      %s66 = sphi 0, %s52
      %s70 = sphi 0, %s70
      %s72 = sphi 0, %s70
      %s73 = sphi 0, %s72
      %s87 = sphi 0, %s73
      %s93 = sphi 0, %s95
      %s96 = sphi 0, %s93
      %s97 = sphi 0, %s96
      %s113 = sphi 0, %s97
    $region4: #{tpu_custom_call.1} parent=1 // loop_header_branch
      %18 = sbr.rel (%p16) target = $region8
    $region5: #{tpu_custom_call.1} parent=1 // loop_body
      %s20 = ssub.s32 %s15, 1
      %s21 = ssub.s32 %s15, 2
      %s22 = sadd.s32 %s15, 1
      %s23 = ssub.s32 %s15, %s22
      %p24 = scmp.eq.s32.totalorder %s23, 0
      %s26 = sadd.s32 %s25, 1
      %s27 = scalar_select %p24, %s25, %s26
      %p30 = pneg %p24
      %p31 = scmp.eq.s32.totalorder %s15, 1
      %p32 = por %p30, %p31
      %p33 = scmp.ne.s32.totalorder %s25, %s28
      %p34 = scmp.eq.s32.totalorder %s15, 0
      %p35 = por %p33, %p34
      %p36 = scmp.ne.s32.totalorder %s25, %s28
      %p37 = scmp.eq.s32.totalorder %s20, 1
      %p38 = por %p36, %p37
      %p39 = scmp.ne.s32.totalorder %s28, %s29
      %p40 = scmp.eq.s32.totalorder %s20, 0
      %p41 = por %p39, %p40
      %p42 = scmp.ne.s32.totalorder %s28, %s29
      %p43 = scmp.eq.s32.totalorder %s21, 1
      %p44 = por %p42, %p43
      %p46 = scmp.ne.s32.totalorder %s29, %s45
      %p47 = scmp.eq.s32.totalorder %s21, 0
      %p48 = por %p46, %p47
      %s50 = sadd.s32 %s49, 1
      %p53 = scmp.eq.s32.totalorder %s15, 1
      %p54 = scmp.ne.s32.totalorder %s49, %s51
      %p55 = scmp.eq.s32.totalorder %s15, 0
      %p56 = por %p54, %p55
      %p57 = scmp.ne.s32.totalorder %s49, %s51
      %p58 = scmp.eq.s32.totalorder %s20, 1
      %p59 = por %p57, %p58
      %p60 = scmp.ne.s32.totalorder %s51, %s52
      %p61 = scmp.eq.s32.totalorder %s20, 0
      %p62 = por %p60, %p61
      %p63 = scmp.ne.s32.totalorder %s51, %s52
      %p64 = scmp.eq.s32.totalorder %s21, 1
      %p65 = por %p63, %p64
      %p67 = scmp.ne.s32.totalorder %s52, %s66
      %p68 = scmp.eq.s32.totalorder %s21, 0
      %p69 = por %p67, %p68
      %s71 = sadd.s32 %s70, 1
      %p74 = scmp.eq.s32.totalorder %s15, 1
      %p75 = scmp.ne.s32.totalorder %s70, %s72
      %p76 = scmp.eq.s32.totalorder %s15, 0
      %p77 = por %p75, %p76
      %p78 = scmp.ne.s32.totalorder %s70, %s72
      %p79 = scmp.eq.s32.totalorder %s20, 1
      %p80 = por %p78, %p79
      %p81 = scmp.ne.s32.totalorder %s72, %s73
      %p82 = scmp.eq.s32.totalorder %s20, 0
      %p83 = por %p81, %p82
      %p84 = scmp.ne.s32.totalorder %s72, %s73
      %p85 = scmp.eq.s32.totalorder %s21, 1
      %p86 = por %p84, %p85
      %p88 = scmp.ne.s32.totalorder %s73, %s87
      %p89 = scmp.eq.s32.totalorder %s21, 0
      %p90 = por %p88, %p89
      %s91 = ssub.s32 %s15, %s22
      %p92 = scmp.eq.s32.totalorder %s91, 0
      %s94 = sadd.s32 %s93, 1
      %s95 = scalar_select %p92, %s93, %s94
      %p98 = pneg %p92
      %p99 = scmp.eq.s32.totalorder %s15, 1
      %p100 = por %p98, %p99
      %p101 = scmp.ne.s32.totalorder %s93, %s96
      %p102 = scmp.eq.s32.totalorder %s15, 0
      %p103 = por %p101, %p102
      %p104 = scmp.ne.s32.totalorder %s93, %s96
      %p105 = scmp.eq.s32.totalorder %s20, 1
      %p106 = por %p104, %p105
      %p107 = scmp.ne.s32.totalorder %s96, %s97
      %p108 = scmp.eq.s32.totalorder %s20, 0
      %p109 = por %p107, %p108
      %p110 = scmp.ne.s32.totalorder %s96, %s97
      %p111 = scmp.eq.s32.totalorder %s21, 1
      %p112 = por %p110, %p111
      %p114 = scmp.ne.s32.totalorder %s97, %s113
      %p115 = scmp.eq.s32.totalorder %s21, 0
      %p116 = por %p114, %p115
      %p117 = scmp.le.s32.totalorder 1, %s15
      %p118 = scmp.lt.s32.totalorder %s15, 3
      %p119 = pnand %p117, %p118
      %p120 = pneg %p119
      // Predicated region
      $region9: #{tpu_custom_call.1} parent=5 // pred_check
        _
      $region10: #{tpu_custom_call.1} parent=5 // pred_check_branch
        %122 = sbr.rel (%p119) target = $region12
      $region11: #{tpu_custom_call.1} parent=5 // pred_region
        %s123 = ssub.s32 %s15, 1
        // Predicated region
        $region13: #{tpu_custom_call.1} parent=11 // pred_check
          %p124 = pneg %p62
        $region14: #{tpu_custom_call.1} parent=11 // pred_check_branch
          %126 = sbr.rel (%p124) target = $region16
        $region15: #{tpu_custom_call.1} parent=11 // pred_region
          _
        $region16: #{tpu_custom_call.1} parent=11 // pred_fallthru
          _
        // Predicated region
        $region17: #{tpu_custom_call.1} parent=11 // pred_check
          %p127 = pneg %p83
        $region18: #{tpu_custom_call.1} parent=11 // pred_check_branch
          %129 = sbr.rel (%p127) target = $region20
        $region19: #{tpu_custom_call.1} parent=11 // pred_region
          _
        $region20: #{tpu_custom_call.1} parent=11 // pred_fallthru
          _
      $region12: #{tpu_custom_call.1} parent=5 // pred_fallthru
        _
      %p130 = scmp.lt.s32.totalorder %s15, 2
      // Predicated region
      $region21: #{tpu_custom_call.1} parent=5 // pred_check
        %p131 = pneg %p130
      $region22: #{tpu_custom_call.1} parent=5 // pred_check_branch
        %133 = sbr.rel (%p131) target = $region24
      $region23: #{tpu_custom_call.1} parent=5 // pred_region
        // Predicated region
        $region25: #{tpu_custom_call.1} parent=23 // pred_check
          %p134 = pneg %p35
        $region26: #{tpu_custom_call.1} parent=23 // pred_check_branch
          %136 = sbr.rel (%p134) target = $region28
        $region27: #{tpu_custom_call.1} parent=23 // pred_region
          %s137 = sand.u32 %s25, 1
          %s138 = scalar_lea.sflag [#allocation3], %s137
          %s139 = sand.u32 %s25, 1
          %s140 = smul.addr %s139, 512
          %s141 = scalar_lea.vmem [#allocation2], %s140
          %s143 = ssub.s32 8192, 8192
          %144 = vsyncadd %s138, %s143
          %s145 = smul.addr %s15, 64
          %s146 = smul.addr %s145, 128
          %s147 = scalar_lea.hbm %s0, %s146
          %s148 = sshll.u32 %s141, 4
          %s149 = int_to_ptr.vmem [resolvable:$true] %s148
          %154 = dma.hbm_to_vmem [thread:$0]  %s147, 8192, %s149, %s138, 1024, 1024, 64
        $region28: #{tpu_custom_call.1} parent=23 // pred_fallthru
          _
      $region24: #{tpu_custom_call.1} parent=5 // pred_fallthru
        _
      %p155 = scmp.le.s32.totalorder 1, %s15
      %p156 = scmp.lt.s32.totalorder %s15, 3
      %p157 = pnand %p155, %p156
      %p158 = pneg %p157
      // Predicated region
      $region29: #{tpu_custom_call.1} parent=5 // pred_check
        _
      $region30: #{tpu_custom_call.1} parent=5 // pred_check_branch
        %160 = sbr.rel (%p157) target = $region32
      $region31: #{tpu_custom_call.1} parent=5 // pred_region
        %s161 = ssub.s32 %s15, 1
        %s162 = sand.u32 %s28, 1
        %s163 = scalar_lea.sflag [#allocation3], %s162
        %s164 = sand.u32 %s28, 1
        %s165 = smul.addr %s164, 512
        %s166 = scalar_lea.vmem [#allocation2], %s165
        // Predicated region
        $region33: #{tpu_custom_call.1} parent=31 // pred_check
          %p167 = pneg %p41
        $region34: #{tpu_custom_call.1} parent=31 // pred_check_branch
          %169 = sbr.rel (%p167) target = $region36
        $region35: #{tpu_custom_call.1} parent=31 // pred_region
          %170 = dma.done %s163, 8192
        $region36: #{tpu_custom_call.1} parent=31 // pred_fallthru
          _
        %s171 = sand.u32 %s28, 1
        %s172 = scalar_lea.sflag [#allocation3], %s171
        %s173 = sand.u32 %s28, 1
        %s174 = smul.addr %s173, 512
        %s175 = scalar_lea.vmem [#allocation2], %s174
        %p176 = pneg %p41
        %p177 = pneg %p38
        %p178 = pneg %p62
        %p179 = pneg %p59
        %p180 = pneg %p83
        %p181 = pneg %p80
        %p182 = pneg %p109
        %p183 = pneg %p106
        %s184 = sand.u32 %s96, 1
        %s185 = scalar_lea.sflag [#allocation4], %s184
        %s186 = sand.u32 %s96, 1
        %s187 = smul.addr %s186, 512
        %s188 = scalar_lea.vmem [#allocation5], %s187
        %v189 = vld [vmem:[%s166] sm:$0xff]
        %v190 = vld [vmem:[%s166 + $0x8] sm:$0xff]
        %v191 = vld [vmem:[%s166 + $0x10] sm:$0xff]
        %v192 = vld [vmem:[%s166 + $0x18] sm:$0xff]
        %v193 = vld [vmem:[%s166 + $0x20] sm:$0xff]
        %v194 = vld [vmem:[%s166 + $0x28] sm:$0xff]
        %v195 = vld [vmem:[%s166 + $0x30] sm:$0xff]
        %v196 = vld [vmem:[%s166 + $0x38] sm:$0xff]
        %v197 = vld [vmem:[%s166 + $0x40] sm:$0xff]
        %v198 = vld [vmem:[%s166 + $0x48] sm:$0xff]
        %v199 = vld [vmem:[%s166 + $0x50] sm:$0xff]
        %v200 = vld [vmem:[%s166 + $0x58] sm:$0xff]
        %v201 = vld [vmem:[%s166 + $0x60] sm:$0xff]
        %v202 = vld [vmem:[%s166 + $0x68] sm:$0xff]
        %v203 = vld [vmem:[%s166 + $0x70] sm:$0xff]
        %v204 = vld [vmem:[%s166 + $0x78] sm:$0xff]
        %v205 = vld [vmem:[%s166 + $0x80] sm:$0xff]
        %v206 = vld [vmem:[%s166 + $0x88] sm:$0xff]
        %v207 = vld [vmem:[%s166 + $0x90] sm:$0xff]
        %v208 = vld [vmem:[%s166 + $0x98] sm:$0xff]
        %v209 = vld [vmem:[%s166 + $0xa0] sm:$0xff]
        %v210 = vld [vmem:[%s166 + $0xa8] sm:$0xff]
        %v211 = vld [vmem:[%s166 + $0xb0] sm:$0xff]
        %v212 = vld [vmem:[%s166 + $0xb8] sm:$0xff]
        %v213 = vld [vmem:[%s166 + $0xc0] sm:$0xff]
        %v214 = vld [vmem:[%s166 + $0xc8] sm:$0xff]
        %v215 = vld [vmem:[%s166 + $0xd0] sm:$0xff]
        %v216 = vld [vmem:[%s166 + $0xd8] sm:$0xff]
        %v217 = vld [vmem:[%s166 + $0xe0] sm:$0xff]
        %v218 = vld [vmem:[%s166 + $0xe8] sm:$0xff]
        %v219 = vld [vmem:[%s166 + $0xf0] sm:$0xff]
        %v220 = vld [vmem:[%s166 + $0xf8] sm:$0xff]
        %v221 = vld [vmem:[%s166 + $0x100] sm:$0xff]
        %v222 = vld [vmem:[%s166 + $0x108] sm:$0xff]
        %v223 = vld [vmem:[%s166 + $0x110] sm:$0xff]
        %v224 = vld [vmem:[%s166 + $0x118] sm:$0xff]
        %v225 = vld [vmem:[%s166 + $0x120] sm:$0xff]
        %v226 = vld [vmem:[%s166 + $0x128] sm:$0xff]
        %v227 = vld [vmem:[%s166 + $0x130] sm:$0xff]
        %v228 = vld [vmem:[%s166 + $0x138] sm:$0xff]
        %v229 = vld [vmem:[%s166 + $0x140] sm:$0xff]
        %v230 = vld [vmem:[%s166 + $0x148] sm:$0xff]
        %v231 = vld [vmem:[%s166 + $0x150] sm:$0xff]
        %v232 = vld [vmem:[%s166 + $0x158] sm:$0xff]
        %v233 = vld [vmem:[%s166 + $0x160] sm:$0xff]
        %v234 = vld [vmem:[%s166 + $0x168] sm:$0xff]
        %v235 = vld [vmem:[%s166 + $0x170] sm:$0xff]
        %v236 = vld [vmem:[%s166 + $0x178] sm:$0xff]
        %v237 = vld [vmem:[%s166 + $0x180] sm:$0xff]
        %v238 = vld [vmem:[%s166 + $0x188] sm:$0xff]
        %v239 = vld [vmem:[%s166 + $0x190] sm:$0xff]
        %v240 = vld [vmem:[%s166 + $0x198] sm:$0xff]
        %v241 = vld [vmem:[%s166 + $0x1a0] sm:$0xff]
        %v242 = vld [vmem:[%s166 + $0x1a8] sm:$0xff]
        %v243 = vld [vmem:[%s166 + $0x1b0] sm:$0xff]
        %v244 = vld [vmem:[%s166 + $0x1b8] sm:$0xff]
        %v245 = vld [vmem:[%s166 + $0x1c0] sm:$0xff]
        %v246 = vld [vmem:[%s166 + $0x1c8] sm:$0xff]
        %v247 = vld [vmem:[%s166 + $0x1d0] sm:$0xff]
        %v248 = vld [vmem:[%s166 + $0x1d8] sm:$0xff]
        %v249 = vld [vmem:[%s166 + $0x1e0] sm:$0xff]
        %v250 = vld [vmem:[%s166 + $0x1e8] sm:$0xff]
        %v251 = vld [vmem:[%s166 + $0x1f0] sm:$0xff]
        %v252 = vld [vmem:[%s166 + $0x1f8] sm:$0xff]
        %v253 = vcombine.low %v189, %v191
        %v254 = vcombine.high %v189, %v191
        %v256 = vunpack.c.l.s4 1983009808
        %v257 = vunpack.c.0.s8 %v256
        %v258 = vlaneseq
        %v259 = vshrl.u32 %v258, 7
        %v260 = vsub.s32 %v257, %v259
        %v261 = vrot.slane %v253, %v260
        %v263 = vunpack.c.l.s4 1983009808
        %v264 = vunpack.c.0.s8 %v263
        %v265 = vlaneseq
        %v266 = vshrl.u32 %v265, 7
        %v267 = vsub.s32 %v264, %v266
        %v268 = vrot.slane %v254, %v267
        %v269 = vcombine.low %v190, %v192
        %v270 = vcombine.high %v190, %v192
        %v272 = vunpack.c.l.s4 1983009808
        %v273 = vunpack.c.0.s8 %v272
        %v274 = vlaneseq
        %v275 = vshrl.u32 %v274, 7
        %v276 = vsub.s32 %v273, %v275
        %v277 = vrot.slane %v269, %v276
        %v279 = vunpack.c.l.s4 1983009808
        %v280 = vunpack.c.0.s8 %v279
        %v281 = vlaneseq
        %v282 = vshrl.u32 %v281, 7
        %v283 = vsub.s32 %v280, %v282
        %v284 = vrot.slane %v270, %v283
        %v285 = vcombine.low %v193, %v195
        %v286 = vcombine.high %v193, %v195
        %v288 = vunpack.c.l.s4 1983009808
        %v289 = vunpack.c.0.s8 %v288
        %v290 = vlaneseq
        %v291 = vshrl.u32 %v290, 7
        %v292 = vsub.s32 %v289, %v291
        %v293 = vrot.slane %v285, %v292
        %v295 = vunpack.c.l.s4 1983009808
        %v296 = vunpack.c.0.s8 %v295
        %v297 = vlaneseq
        %v298 = vshrl.u32 %v297, 7
        %v299 = vsub.s32 %v296, %v298
        %v300 = vrot.slane %v286, %v299
        %v301 = vcombine.low %v194, %v196
        %v302 = vcombine.high %v194, %v196
        %v304 = vunpack.c.l.s4 1983009808
        %v305 = vunpack.c.0.s8 %v304
        %v306 = vlaneseq
        %v307 = vshrl.u32 %v306, 7
        %v308 = vsub.s32 %v305, %v307
        %v309 = vrot.slane %v301, %v308
        %v311 = vunpack.c.l.s4 1983009808
        %v312 = vunpack.c.0.s8 %v311
        %v313 = vlaneseq
        %v314 = vshrl.u32 %v313, 7
        %v315 = vsub.s32 %v312, %v314
        %v316 = vrot.slane %v302, %v315
        %v317 = vcombine.low %v261, %v277
        %v318 = vcombine.high %v261, %v277
        %v320 = vunpack.c.l.s4 1934713408
        %v321 = vunpack.c.0.s8 %v320
        %v322 = vlaneseq
        %v323 = vshrl.u32 %v322, 7
        %v324 = vsub.s32 %v321, %v323
        %v325 = vrot.slane %v317, %v324
        %v327 = vunpack.c.l.s4 1934713408
        %v328 = vunpack.c.0.s8 %v327
        %v329 = vlaneseq
        %v330 = vshrl.u32 %v329, 7
        %v331 = vsub.s32 %v328, %v330
        %v332 = vrot.slane %v318, %v331
        %v333 = vcombine.low %v268, %v284
        %v334 = vcombine.high %v268, %v284
        %v336 = vunpack.c.l.s4 1934713408
        %v337 = vunpack.c.0.s8 %v336
        %v338 = vlaneseq
        %v339 = vshrl.u32 %v338, 7
        %v340 = vsub.s32 %v337, %v339
        %v341 = vrot.slane %v333, %v340
        %v343 = vunpack.c.l.s4 1934713408
        %v344 = vunpack.c.0.s8 %v343
        %v345 = vlaneseq
        %v346 = vshrl.u32 %v345, 7
        %v347 = vsub.s32 %v344, %v346
        %v348 = vrot.slane %v334, %v347
        %v349 = vcombine.low %v293, %v309
        %v350 = vcombine.high %v293, %v309
        %v352 = vunpack.c.l.s4 1934713408
        %v353 = vunpack.c.0.s8 %v352
        %v354 = vlaneseq
        %v355 = vshrl.u32 %v354, 7
        %v356 = vsub.s32 %v353, %v355
        %v357 = vrot.slane %v349, %v356
        %v359 = vunpack.c.l.s4 1934713408
        %v360 = vunpack.c.0.s8 %v359
        %v361 = vlaneseq
        %v362 = vshrl.u32 %v361, 7
        %v363 = vsub.s32 %v360, %v362
        %v364 = vrot.slane %v350, %v363
        %v365 = vcombine.low %v300, %v316
        %v366 = vcombine.high %v300, %v316
        %v368 = vunpack.c.l.s4 1934713408
        %v369 = vunpack.c.0.s8 %v368
        %v370 = vlaneseq
        %v371 = vshrl.u32 %v370, 7
        %v372 = vsub.s32 %v369, %v371
        %v373 = vrot.slane %v365, %v372
        %v375 = vunpack.c.l.s4 1934713408
        %v376 = vunpack.c.0.s8 %v375
        %v377 = vlaneseq
        %v378 = vshrl.u32 %v377, 7
        %v379 = vsub.s32 %v376, %v378
        %v380 = vrot.slane %v366, %v379
        %v381 = vcombine.low %v325, %v357
        %v382 = vcombine.high %v325, %v357
        %v383 = vcombine.low %v332, %v364
        %v384 = vcombine.high %v332, %v364
        %v385 = vcombine.low %v341, %v373
        %v386 = vcombine.high %v341, %v373
        %v387 = vcombine.low %v348, %v380
        %v388 = vcombine.high %v348, %v380
        %v389 = vcombine.low %v197, %v199
        %v390 = vcombine.high %v197, %v199
        %v392 = vunpack.c.l.s4 1983009808
        %v393 = vunpack.c.0.s8 %v392
        %v394 = vlaneseq
        %v395 = vshrl.u32 %v394, 7
        %v396 = vsub.s32 %v393, %v395
        %v397 = vrot.slane %v389, %v396
        %v399 = vunpack.c.l.s4 1983009808
        %v400 = vunpack.c.0.s8 %v399
        %v401 = vlaneseq
        %v402 = vshrl.u32 %v401, 7
        %v403 = vsub.s32 %v400, %v402
        %v404 = vrot.slane %v390, %v403
        %v405 = vcombine.low %v198, %v200
        %v406 = vcombine.high %v198, %v200
        %v408 = vunpack.c.l.s4 1983009808
        %v409 = vunpack.c.0.s8 %v408
        %v410 = vlaneseq
        %v411 = vshrl.u32 %v410, 7
        %v412 = vsub.s32 %v409, %v411
        %v413 = vrot.slane %v405, %v412
        %v415 = vunpack.c.l.s4 1983009808
        %v416 = vunpack.c.0.s8 %v415
        %v417 = vlaneseq
        %v418 = vshrl.u32 %v417, 7
        %v419 = vsub.s32 %v416, %v418
        %v420 = vrot.slane %v406, %v419
        %v421 = vcombine.low %v201, %v203
        %v422 = vcombine.high %v201, %v203
        %v424 = vunpack.c.l.s4 1983009808
        %v425 = vunpack.c.0.s8 %v424
        %v426 = vlaneseq
        %v427 = vshrl.u32 %v426, 7
        %v428 = vsub.s32 %v425, %v427
        %v429 = vrot.slane %v421, %v428
        %v431 = vunpack.c.l.s4 1983009808
        %v432 = vunpack.c.0.s8 %v431
        %v433 = vlaneseq
        %v434 = vshrl.u32 %v433, 7
        %v435 = vsub.s32 %v432, %v434
        %v436 = vrot.slane %v422, %v435
        %v437 = vcombine.low %v202, %v204
        %v438 = vcombine.high %v202, %v204
        %v440 = vunpack.c.l.s4 1983009808
        %v441 = vunpack.c.0.s8 %v440
        %v442 = vlaneseq
        %v443 = vshrl.u32 %v442, 7
        %v444 = vsub.s32 %v441, %v443
        %v445 = vrot.slane %v437, %v444
        %v447 = vunpack.c.l.s4 1983009808
        %v448 = vunpack.c.0.s8 %v447
        %v449 = vlaneseq
        %v450 = vshrl.u32 %v449, 7
        %v451 = vsub.s32 %v448, %v450
        %v452 = vrot.slane %v438, %v451
        %v453 = vcombine.low %v397, %v413
        %v454 = vcombine.high %v397, %v413
        %v456 = vunpack.c.l.s4 1934713408
        %v457 = vunpack.c.0.s8 %v456
        %v458 = vlaneseq
        %v459 = vshrl.u32 %v458, 7
        %v460 = vsub.s32 %v457, %v459
        %v461 = vrot.slane %v453, %v460
        %v463 = vunpack.c.l.s4 1934713408
        %v464 = vunpack.c.0.s8 %v463
        %v465 = vlaneseq
        %v466 = vshrl.u32 %v465, 7
        %v467 = vsub.s32 %v464, %v466
        %v468 = vrot.slane %v454, %v467
        %v469 = vcombine.low %v404, %v420
        %v470 = vcombine.high %v404, %v420
        %v472 = vunpack.c.l.s4 1934713408
        %v473 = vunpack.c.0.s8 %v472
        %v474 = vlaneseq
        %v475 = vshrl.u32 %v474, 7
        %v476 = vsub.s32 %v473, %v475
        %v477 = vrot.slane %v469, %v476
        %v479 = vunpack.c.l.s4 1934713408
        %v480 = vunpack.c.0.s8 %v479
        %v481 = vlaneseq
        %v482 = vshrl.u32 %v481, 7
        %v483 = vsub.s32 %v480, %v482
        %v484 = vrot.slane %v470, %v483
        %v485 = vcombine.low %v429, %v445
        %v486 = vcombine.high %v429, %v445
        %v488 = vunpack.c.l.s4 1934713408
        %v489 = vunpack.c.0.s8 %v488
        %v490 = vlaneseq
        %v491 = vshrl.u32 %v490, 7
        %v492 = vsub.s32 %v489, %v491
        %v493 = vrot.slane %v485, %v492
        %v495 = vunpack.c.l.s4 1934713408
        %v496 = vunpack.c.0.s8 %v495
        %v497 = vlaneseq
        %v498 = vshrl.u32 %v497, 7
        %v499 = vsub.s32 %v496, %v498
        %v500 = vrot.slane %v486, %v499
        %v501 = vcombine.low %v436, %v452
        %v502 = vcombine.high %v436, %v452
        %v504 = vunpack.c.l.s4 1934713408
        %v505 = vunpack.c.0.s8 %v504
        %v506 = vlaneseq
        %v507 = vshrl.u32 %v506, 7
        %v508 = vsub.s32 %v505, %v507
        %v509 = vrot.slane %v501, %v508
        %v511 = vunpack.c.l.s4 1934713408
        %v512 = vunpack.c.0.s8 %v511
        %v513 = vlaneseq
        %v514 = vshrl.u32 %v513, 7
        %v515 = vsub.s32 %v512, %v514
        %v516 = vrot.slane %v502, %v515
        %v517 = vcombine.low %v461, %v493
        %v518 = vcombine.high %v461, %v493
        %v519 = vcombine.low %v468, %v500
        %v520 = vcombine.high %v468, %v500
        %v521 = vcombine.low %v477, %v509
        %v522 = vcombine.high %v477, %v509
        %v523 = vcombine.low %v484, %v516
        %v524 = vcombine.high %v484, %v516
        %v525 = vcombine.low %v205, %v207
        %v526 = vcombine.high %v205, %v207
        %v528 = vunpack.c.l.s4 1983009808
        %v529 = vunpack.c.0.s8 %v528
        %v530 = vlaneseq
        %v531 = vshrl.u32 %v530, 7
        %v532 = vsub.s32 %v529, %v531
        %v533 = vrot.slane %v525, %v532
        %v535 = vunpack.c.l.s4 1983009808
        %v536 = vunpack.c.0.s8 %v535
        %v537 = vlaneseq
        %v538 = vshrl.u32 %v537, 7
        %v539 = vsub.s32 %v536, %v538
        %v540 = vrot.slane %v526, %v539
        %v541 = vcombine.low %v206, %v208
        %v542 = vcombine.high %v206, %v208
        %v544 = vunpack.c.l.s4 1983009808
        %v545 = vunpack.c.0.s8 %v544
        %v546 = vlaneseq
        %v547 = vshrl.u32 %v546, 7
        %v548 = vsub.s32 %v545, %v547
        %v549 = vrot.slane %v541, %v548
        %v551 = vunpack.c.l.s4 1983009808
        %v552 = vunpack.c.0.s8 %v551
        %v553 = vlaneseq
        %v554 = vshrl.u32 %v553, 7
        %v555 = vsub.s32 %v552, %v554
        %v556 = vrot.slane %v542, %v555
        %v557 = vcombine.low %v209, %v211
        %v558 = vcombine.high %v209, %v211
        %v560 = vunpack.c.l.s4 1983009808
        %v561 = vunpack.c.0.s8 %v560
        %v562 = vlaneseq
        %v563 = vshrl.u32 %v562, 7
        %v564 = vsub.s32 %v561, %v563
        %v565 = vrot.slane %v557, %v564
        %v567 = vunpack.c.l.s4 1983009808
        %v568 = vunpack.c.0.s8 %v567
        %v569 = vlaneseq
        %v570 = vshrl.u32 %v569, 7
        %v571 = vsub.s32 %v568, %v570
        %v572 = vrot.slane %v558, %v571
        %v573 = vcombine.low %v210, %v212
        %v574 = vcombine.high %v210, %v212
        %v576 = vunpack.c.l.s4 1983009808
        %v577 = vunpack.c.0.s8 %v576
        %v578 = vlaneseq
        %v579 = vshrl.u32 %v578, 7
        %v580 = vsub.s32 %v577, %v579
        %v581 = vrot.slane %v573, %v580
        %v583 = vunpack.c.l.s4 1983009808
        %v584 = vunpack.c.0.s8 %v583
        %v585 = vlaneseq
        %v586 = vshrl.u32 %v585, 7
        %v587 = vsub.s32 %v584, %v586
        %v588 = vrot.slane %v574, %v587
        %v589 = vcombine.low %v533, %v549
        %v590 = vcombine.high %v533, %v549
        %v592 = vunpack.c.l.s4 1934713408
        %v593 = vunpack.c.0.s8 %v592
        %v594 = vlaneseq
        %v595 = vshrl.u32 %v594, 7
        %v596 = vsub.s32 %v593, %v595
        %v597 = vrot.slane %v589, %v596
        %v599 = vunpack.c.l.s4 1934713408
        %v600 = vunpack.c.0.s8 %v599
        %v601 = vlaneseq
        %v602 = vshrl.u32 %v601, 7
        %v603 = vsub.s32 %v600, %v602
        %v604 = vrot.slane %v590, %v603
        %v605 = vcombine.low %v540, %v556
        %v606 = vcombine.high %v540, %v556
        %v608 = vunpack.c.l.s4 1934713408
        %v609 = vunpack.c.0.s8 %v608
        %v610 = vlaneseq
        %v611 = vshrl.u32 %v610, 7
        %v612 = vsub.s32 %v609, %v611
        %v613 = vrot.slane %v605, %v612
        %v615 = vunpack.c.l.s4 1934713408
        %v616 = vunpack.c.0.s8 %v615
        %v617 = vlaneseq
        %v618 = vshrl.u32 %v617, 7
        %v619 = vsub.s32 %v616, %v618
        %v620 = vrot.slane %v606, %v619
        %v621 = vcombine.low %v565, %v581
        %v622 = vcombine.high %v565, %v581
        %v624 = vunpack.c.l.s4 1934713408
        %v625 = vunpack.c.0.s8 %v624
        %v626 = vlaneseq
        %v627 = vshrl.u32 %v626, 7
        %v628 = vsub.s32 %v625, %v627
        %v629 = vrot.slane %v621, %v628
        %v631 = vunpack.c.l.s4 1934713408
        %v632 = vunpack.c.0.s8 %v631
        %v633 = vlaneseq
        %v634 = vshrl.u32 %v633, 7
        %v635 = vsub.s32 %v632, %v634
        %v636 = vrot.slane %v622, %v635
        %v637 = vcombine.low %v572, %v588
        %v638 = vcombine.high %v572, %v588
        %v640 = vunpack.c.l.s4 1934713408
        %v641 = vunpack.c.0.s8 %v640
        %v642 = vlaneseq
        %v643 = vshrl.u32 %v642, 7
        %v644 = vsub.s32 %v641, %v643
        %v645 = vrot.slane %v637, %v644
        %v647 = vunpack.c.l.s4 1934713408
        %v648 = vunpack.c.0.s8 %v647
        %v649 = vlaneseq
        %v650 = vshrl.u32 %v649, 7
        %v651 = vsub.s32 %v648, %v650
        %v652 = vrot.slane %v638, %v651
        %v653 = vcombine.low %v597, %v629
        %v654 = vcombine.high %v597, %v629
        %v655 = vcombine.low %v604, %v636
        %v656 = vcombine.high %v604, %v636
        %v657 = vcombine.low %v613, %v645
        %v658 = vcombine.high %v613, %v645
        %v659 = vcombine.low %v620, %v652
        %v660 = vcombine.high %v620, %v652
        %v661 = vcombine.low %v213, %v215
        %v662 = vcombine.high %v213, %v215
        %v664 = vunpack.c.l.s4 1983009808
        %v665 = vunpack.c.0.s8 %v664
        %v666 = vlaneseq
        %v667 = vshrl.u32 %v666, 7
        %v668 = vsub.s32 %v665, %v667
        %v669 = vrot.slane %v661, %v668
        %v671 = vunpack.c.l.s4 1983009808
        %v672 = vunpack.c.0.s8 %v671
        %v673 = vlaneseq
        %v674 = vshrl.u32 %v673, 7
        %v675 = vsub.s32 %v672, %v674
        %v676 = vrot.slane %v662, %v675
        %v677 = vcombine.low %v214, %v216
        %v678 = vcombine.high %v214, %v216
        %v680 = vunpack.c.l.s4 1983009808
        %v681 = vunpack.c.0.s8 %v680
        %v682 = vlaneseq
        %v683 = vshrl.u32 %v682, 7
        %v684 = vsub.s32 %v681, %v683
        %v685 = vrot.slane %v677, %v684
        %v687 = vunpack.c.l.s4 1983009808
        %v688 = vunpack.c.0.s8 %v687
        %v689 = vlaneseq
        %v690 = vshrl.u32 %v689, 7
        %v691 = vsub.s32 %v688, %v690
        %v692 = vrot.slane %v678, %v691
        %v693 = vcombine.low %v217, %v219
        %v694 = vcombine.high %v217, %v219
        %v696 = vunpack.c.l.s4 1983009808
        %v697 = vunpack.c.0.s8 %v696
        %v698 = vlaneseq
        %v699 = vshrl.u32 %v698, 7
        %v700 = vsub.s32 %v697, %v699
        %v701 = vrot.slane %v693, %v700
        %v703 = vunpack.c.l.s4 1983009808
        %v704 = vunpack.c.0.s8 %v703
        %v705 = vlaneseq
        %v706 = vshrl.u32 %v705, 7
        %v707 = vsub.s32 %v704, %v706
        %v708 = vrot.slane %v694, %v707
        %v709 = vcombine.low %v218, %v220
        %v710 = vcombine.high %v218, %v220
        %v712 = vunpack.c.l.s4 1983009808
        %v713 = vunpack.c.0.s8 %v712
        %v714 = vlaneseq
        %v715 = vshrl.u32 %v714, 7
        %v716 = vsub.s32 %v713, %v715
        %v717 = vrot.slane %v709, %v716
        %v719 = vunpack.c.l.s4 1983009808
        %v720 = vunpack.c.0.s8 %v719
        %v721 = vlaneseq
        %v722 = vshrl.u32 %v721, 7
        %v723 = vsub.s32 %v720, %v722
        %v724 = vrot.slane %v710, %v723
        %v725 = vcombine.low %v669, %v685
        %v726 = vcombine.high %v669, %v685
        %v728 = vunpack.c.l.s4 1934713408
        %v729 = vunpack.c.0.s8 %v728
        %v730 = vlaneseq
        %v731 = vshrl.u32 %v730, 7
        %v732 = vsub.s32 %v729, %v731
        %v733 = vrot.slane %v725, %v732
        %v735 = vunpack.c.l.s4 1934713408
        %v736 = vunpack.c.0.s8 %v735
        %v737 = vlaneseq
        %v738 = vshrl.u32 %v737, 7
        %v739 = vsub.s32 %v736, %v738
        %v740 = vrot.slane %v726, %v739
        %v741 = vcombine.low %v676, %v692
        %v742 = vcombine.high %v676, %v692
        %v744 = vunpack.c.l.s4 1934713408
        %v745 = vunpack.c.0.s8 %v744
        %v746 = vlaneseq
        %v747 = vshrl.u32 %v746, 7
        %v748 = vsub.s32 %v745, %v747
        %v749 = vrot.slane %v741, %v748
        %v751 = vunpack.c.l.s4 1934713408
        %v752 = vunpack.c.0.s8 %v751
        %v753 = vlaneseq
        %v754 = vshrl.u32 %v753, 7
        %v755 = vsub.s32 %v752, %v754
        %v756 = vrot.slane %v742, %v755
        %v757 = vcombine.low %v701, %v717
        %v758 = vcombine.high %v701, %v717
        %v760 = vunpack.c.l.s4 1934713408
        %v761 = vunpack.c.0.s8 %v760
        %v762 = vlaneseq
        %v763 = vshrl.u32 %v762, 7
        %v764 = vsub.s32 %v761, %v763
        %v765 = vrot.slane %v757, %v764
        %v767 = vunpack.c.l.s4 1934713408
        %v768 = vunpack.c.0.s8 %v767
        %v769 = vlaneseq
        %v770 = vshrl.u32 %v769, 7
        %v771 = vsub.s32 %v768, %v770
        %v772 = vrot.slane %v758, %v771
        %v773 = vcombine.low %v708, %v724
        %v774 = vcombine.high %v708, %v724
        %v776 = vunpack.c.l.s4 1934713408
        %v777 = vunpack.c.0.s8 %v776
        %v778 = vlaneseq
        %v779 = vshrl.u32 %v778, 7
        %v780 = vsub.s32 %v777, %v779
        %v781 = vrot.slane %v773, %v780
        %v783 = vunpack.c.l.s4 1934713408
        %v784 = vunpack.c.0.s8 %v783
        %v785 = vlaneseq
        %v786 = vshrl.u32 %v785, 7
        %v787 = vsub.s32 %v784, %v786
        %v788 = vrot.slane %v774, %v787
        %v789 = vcombine.low %v733, %v765
        %v790 = vcombine.high %v733, %v765
        %v791 = vcombine.low %v740, %v772
        %v792 = vcombine.high %v740, %v772
        %v793 = vcombine.low %v749, %v781
        %v794 = vcombine.high %v749, %v781
        %v795 = vcombine.low %v756, %v788
        %v796 = vcombine.high %v756, %v788
        %v797 = vcombine.low %v221, %v223
        %v798 = vcombine.high %v221, %v223
        %v800 = vunpack.c.l.s4 1983009808
        %v801 = vunpack.c.0.s8 %v800
        %v802 = vlaneseq
        %v803 = vshrl.u32 %v802, 7
        %v804 = vsub.s32 %v801, %v803
        %v805 = vrot.slane %v797, %v804
        %v807 = vunpack.c.l.s4 1983009808
        %v808 = vunpack.c.0.s8 %v807
        %v809 = vlaneseq
        %v810 = vshrl.u32 %v809, 7
        %v811 = vsub.s32 %v808, %v810
        %v812 = vrot.slane %v798, %v811
        %v813 = vcombine.low %v222, %v224
        %v814 = vcombine.high %v222, %v224
        %v816 = vunpack.c.l.s4 1983009808
        %v817 = vunpack.c.0.s8 %v816
        %v818 = vlaneseq
        %v819 = vshrl.u32 %v818, 7
        %v820 = vsub.s32 %v817, %v819
        %v821 = vrot.slane %v813, %v820
        %v823 = vunpack.c.l.s4 1983009808
        %v824 = vunpack.c.0.s8 %v823
        %v825 = vlaneseq
        %v826 = vshrl.u32 %v825, 7
        %v827 = vsub.s32 %v824, %v826
        %v828 = vrot.slane %v814, %v827
        %v829 = vcombine.low %v225, %v227
        %v830 = vcombine.high %v225, %v227
        %v832 = vunpack.c.l.s4 1983009808
        %v833 = vunpack.c.0.s8 %v832
        %v834 = vlaneseq
        %v835 = vshrl.u32 %v834, 7
        %v836 = vsub.s32 %v833, %v835
        %v837 = vrot.slane %v829, %v836
        %v839 = vunpack.c.l.s4 1983009808
        %v840 = vunpack.c.0.s8 %v839
        %v841 = vlaneseq
        %v842 = vshrl.u32 %v841, 7
        %v843 = vsub.s32 %v840, %v842
        %v844 = vrot.slane %v830, %v843
        %v845 = vcombine.low %v226, %v228
        %v846 = vcombine.high %v226, %v228
        %v848 = vunpack.c.l.s4 1983009808
        %v849 = vunpack.c.0.s8 %v848
        %v850 = vlaneseq
        %v851 = vshrl.u32 %v850, 7
        %v852 = vsub.s32 %v849, %v851
        %v853 = vrot.slane %v845, %v852
        %v855 = vunpack.c.l.s4 1983009808
        %v856 = vunpack.c.0.s8 %v855
        %v857 = vlaneseq
        %v858 = vshrl.u32 %v857, 7
        %v859 = vsub.s32 %v856, %v858
        %v860 = vrot.slane %v846, %v859
        %v861 = vcombine.low %v805, %v821
        %v862 = vcombine.high %v805, %v821
        %v864 = vunpack.c.l.s4 1934713408
        %v865 = vunpack.c.0.s8 %v864
        %v866 = vlaneseq
        %v867 = vshrl.u32 %v866, 7
        %v868 = vsub.s32 %v865, %v867
        %v869 = vrot.slane %v861, %v868
        %v871 = vunpack.c.l.s4 1934713408
        %v872 = vunpack.c.0.s8 %v871
        %v873 = vlaneseq
        %v874 = vshrl.u32 %v873, 7
        %v875 = vsub.s32 %v872, %v874
        %v876 = vrot.slane %v862, %v875
        %v877 = vcombine.low %v812, %v828
        %v878 = vcombine.high %v812, %v828
        %v880 = vunpack.c.l.s4 1934713408
        %v881 = vunpack.c.0.s8 %v880
        %v882 = vlaneseq
        %v883 = vshrl.u32 %v882, 7
        %v884 = vsub.s32 %v881, %v883
        %v885 = vrot.slane %v877, %v884
        %v887 = vunpack.c.l.s4 1934713408
        %v888 = vunpack.c.0.s8 %v887
        %v889 = vlaneseq
        %v890 = vshrl.u32 %v889, 7
        %v891 = vsub.s32 %v888, %v890
        %v892 = vrot.slane %v878, %v891
        %v893 = vcombine.low %v837, %v853
        %v894 = vcombine.high %v837, %v853
        %v896 = vunpack.c.l.s4 1934713408
        %v897 = vunpack.c.0.s8 %v896
        %v898 = vlaneseq
        %v899 = vshrl.u32 %v898, 7
        %v900 = vsub.s32 %v897, %v899
        %v901 = vrot.slane %v893, %v900
        %v903 = vunpack.c.l.s4 1934713408
        %v904 = vunpack.c.0.s8 %v903
        %v905 = vlaneseq
        %v906 = vshrl.u32 %v905, 7
        %v907 = vsub.s32 %v904, %v906
        %v908 = vrot.slane %v894, %v907
        %v909 = vcombine.low %v844, %v860
        %v910 = vcombine.high %v844, %v860
        %v912 = vunpack.c.l.s4 1934713408
        %v913 = vunpack.c.0.s8 %v912
        %v914 = vlaneseq
        %v915 = vshrl.u32 %v914, 7
        %v916 = vsub.s32 %v913, %v915
        %v917 = vrot.slane %v909, %v916
        %v919 = vunpack.c.l.s4 1934713408
        %v920 = vunpack.c.0.s8 %v919
        %v921 = vlaneseq
        %v922 = vshrl.u32 %v921, 7
        %v923 = vsub.s32 %v920, %v922
        %v924 = vrot.slane %v910, %v923
        %v925 = vcombine.low %v869, %v901
        %v926 = vcombine.high %v869, %v901
        %v927 = vcombine.low %v876, %v908
        %v928 = vcombine.high %v876, %v908
        %v929 = vcombine.low %v885, %v917
        %v930 = vcombine.high %v885, %v917
        %v931 = vcombine.low %v892, %v924
        %v932 = vcombine.high %v892, %v924
        %v933 = vcombine.low %v229, %v231
        %v934 = vcombine.high %v229, %v231
        %v936 = vunpack.c.l.s4 1983009808
        %v937 = vunpack.c.0.s8 %v936
        %v938 = vlaneseq
        %v939 = vshrl.u32 %v938, 7
        %v940 = vsub.s32 %v937, %v939
        %v941 = vrot.slane %v933, %v940
        %v943 = vunpack.c.l.s4 1983009808
        %v944 = vunpack.c.0.s8 %v943
        %v945 = vlaneseq
        %v946 = vshrl.u32 %v945, 7
        %v947 = vsub.s32 %v944, %v946
        %v948 = vrot.slane %v934, %v947
        %v949 = vcombine.low %v230, %v232
        %v950 = vcombine.high %v230, %v232
        %v952 = vunpack.c.l.s4 1983009808
        %v953 = vunpack.c.0.s8 %v952
        %v954 = vlaneseq
        %v955 = vshrl.u32 %v954, 7
        %v956 = vsub.s32 %v953, %v955
        %v957 = vrot.slane %v949, %v956
        %v959 = vunpack.c.l.s4 1983009808
        %v960 = vunpack.c.0.s8 %v959
        %v961 = vlaneseq
        %v962 = vshrl.u32 %v961, 7
        %v963 = vsub.s32 %v960, %v962
        %v964 = vrot.slane %v950, %v963
        %v965 = vcombine.low %v233, %v235
        %v966 = vcombine.high %v233, %v235
        %v968 = vunpack.c.l.s4 1983009808
        %v969 = vunpack.c.0.s8 %v968
        %v970 = vlaneseq
        %v971 = vshrl.u32 %v970, 7
        %v972 = vsub.s32 %v969, %v971
        %v973 = vrot.slane %v965, %v972
        %v975 = vunpack.c.l.s4 1983009808
        %v976 = vunpack.c.0.s8 %v975
        %v977 = vlaneseq
        %v978 = vshrl.u32 %v977, 7
        %v979 = vsub.s32 %v976, %v978
        %v980 = vrot.slane %v966, %v979
        %v981 = vcombine.low %v234, %v236
        %v982 = vcombine.high %v234, %v236
        %v984 = vunpack.c.l.s4 1983009808
        %v985 = vunpack.c.0.s8 %v984
        %v986 = vlaneseq
        %v987 = vshrl.u32 %v986, 7
        %v988 = vsub.s32 %v985, %v987
        %v989 = vrot.slane %v981, %v988
        %v991 = vunpack.c.l.s4 1983009808
        %v992 = vunpack.c.0.s8 %v991
        %v993 = vlaneseq
        %v994 = vshrl.u32 %v993, 7
        %v995 = vsub.s32 %v992, %v994
        %v996 = vrot.slane %v982, %v995
        %v997 = vcombine.low %v941, %v957
        %v998 = vcombine.high %v941, %v957
        %v1000 = vunpack.c.l.s4 1934713408
        %v1001 = vunpack.c.0.s8 %v1000
        %v1002 = vlaneseq
        %v1003 = vshrl.u32 %v1002, 7
        %v1004 = vsub.s32 %v1001, %v1003
        %v1005 = vrot.slane %v997, %v1004
        %v1007 = vunpack.c.l.s4 1934713408
        %v1008 = vunpack.c.0.s8 %v1007
        %v1009 = vlaneseq
        %v1010 = vshrl.u32 %v1009, 7
        %v1011 = vsub.s32 %v1008, %v1010
        %v1012 = vrot.slane %v998, %v1011
        %v1013 = vcombine.low %v948, %v964
        %v1014 = vcombine.high %v948, %v964
        %v1016 = vunpack.c.l.s4 1934713408
        %v1017 = vunpack.c.0.s8 %v1016
        %v1018 = vlaneseq
        %v1019 = vshrl.u32 %v1018, 7
        %v1020 = vsub.s32 %v1017, %v1019
        %v1021 = vrot.slane %v1013, %v1020
        %v1023 = vunpack.c.l.s4 1934713408
        %v1024 = vunpack.c.0.s8 %v1023
        %v1025 = vlaneseq
        %v1026 = vshrl.u32 %v1025, 7
        %v1027 = vsub.s32 %v1024, %v1026
        %v1028 = vrot.slane %v1014, %v1027
        %v1029 = vcombine.low %v973, %v989
        %v1030 = vcombine.high %v973, %v989
        %v1032 = vunpack.c.l.s4 1934713408
        %v1033 = vunpack.c.0.s8 %v1032
        %v1034 = vlaneseq
        %v1035 = vshrl.u32 %v1034, 7
        %v1036 = vsub.s32 %v1033, %v1035
        %v1037 = vrot.slane %v1029, %v1036
        %v1039 = vunpack.c.l.s4 1934713408
        %v1040 = vunpack.c.0.s8 %v1039
        %v1041 = vlaneseq
        %v1042 = vshrl.u32 %v1041, 7
        %v1043 = vsub.s32 %v1040, %v1042
        %v1044 = vrot.slane %v1030, %v1043
        %v1045 = vcombine.low %v980, %v996
        %v1046 = vcombine.high %v980, %v996
        %v1048 = vunpack.c.l.s4 1934713408
        %v1049 = vunpack.c.0.s8 %v1048
        %v1050 = vlaneseq
        %v1051 = vshrl.u32 %v1050, 7
        %v1052 = vsub.s32 %v1049, %v1051
        %v1053 = vrot.slane %v1045, %v1052
        %v1055 = vunpack.c.l.s4 1934713408
        %v1056 = vunpack.c.0.s8 %v1055
        %v1057 = vlaneseq
        %v1058 = vshrl.u32 %v1057, 7
        %v1059 = vsub.s32 %v1056, %v1058
        %v1060 = vrot.slane %v1046, %v1059
        %v1061 = vcombine.low %v1005, %v1037
        %v1062 = vcombine.high %v1005, %v1037
        %v1063 = vcombine.low %v1012, %v1044
        %v1064 = vcombine.high %v1012, %v1044
        %v1065 = vcombine.low %v1021, %v1053
        %v1066 = vcombine.high %v1021, %v1053
        %v1067 = vcombine.low %v1028, %v1060
        %v1068 = vcombine.high %v1028, %v1060
        %v1069 = vcombine.low %v237, %v239
        %v1070 = vcombine.high %v237, %v239
        %v1072 = vunpack.c.l.s4 1983009808
        %v1073 = vunpack.c.0.s8 %v1072
        %v1074 = vlaneseq
        %v1075 = vshrl.u32 %v1074, 7
        %v1076 = vsub.s32 %v1073, %v1075
        %v1077 = vrot.slane %v1069, %v1076
        %v1079 = vunpack.c.l.s4 1983009808
        %v1080 = vunpack.c.0.s8 %v1079
        %v1081 = vlaneseq
        %v1082 = vshrl.u32 %v1081, 7
        %v1083 = vsub.s32 %v1080, %v1082
        %v1084 = vrot.slane %v1070, %v1083
        %v1085 = vcombine.low %v238, %v240
        %v1086 = vcombine.high %v238, %v240
        %v1088 = vunpack.c.l.s4 1983009808
        %v1089 = vunpack.c.0.s8 %v1088
        %v1090 = vlaneseq
        %v1091 = vshrl.u32 %v1090, 7
        %v1092 = vsub.s32 %v1089, %v1091
        %v1093 = vrot.slane %v1085, %v1092
        %v1095 = vunpack.c.l.s4 1983009808
        %v1096 = vunpack.c.0.s8 %v1095
        %v1097 = vlaneseq
        %v1098 = vshrl.u32 %v1097, 7
        %v1099 = vsub.s32 %v1096, %v1098
        %v1100 = vrot.slane %v1086, %v1099
        %v1101 = vcombine.low %v241, %v243
        %v1102 = vcombine.high %v241, %v243
        %v1104 = vunpack.c.l.s4 1983009808
        %v1105 = vunpack.c.0.s8 %v1104
        %v1106 = vlaneseq
        %v1107 = vshrl.u32 %v1106, 7
        %v1108 = vsub.s32 %v1105, %v1107
        %v1109 = vrot.slane %v1101, %v1108
        %v1111 = vunpack.c.l.s4 1983009808
        %v1112 = vunpack.c.0.s8 %v1111
        %v1113 = vlaneseq
        %v1114 = vshrl.u32 %v1113, 7
        %v1115 = vsub.s32 %v1112, %v1114
        %v1116 = vrot.slane %v1102, %v1115
        %v1117 = vcombine.low %v242, %v244
        %v1118 = vcombine.high %v242, %v244
        %v1120 = vunpack.c.l.s4 1983009808
        %v1121 = vunpack.c.0.s8 %v1120
        %v1122 = vlaneseq
        %v1123 = vshrl.u32 %v1122, 7
        %v1124 = vsub.s32 %v1121, %v1123
        %v1125 = vrot.slane %v1117, %v1124
        %v1127 = vunpack.c.l.s4 1983009808
        %v1128 = vunpack.c.0.s8 %v1127
        %v1129 = vlaneseq
        %v1130 = vshrl.u32 %v1129, 7
        %v1131 = vsub.s32 %v1128, %v1130
        %v1132 = vrot.slane %v1118, %v1131
        %v1133 = vcombine.low %v1077, %v1093
        %v1134 = vcombine.high %v1077, %v1093
        %v1136 = vunpack.c.l.s4 1934713408
        %v1137 = vunpack.c.0.s8 %v1136
        %v1138 = vlaneseq
        %v1139 = vshrl.u32 %v1138, 7
        %v1140 = vsub.s32 %v1137, %v1139
        %v1141 = vrot.slane %v1133, %v1140
        %v1143 = vunpack.c.l.s4 1934713408
        %v1144 = vunpack.c.0.s8 %v1143
        %v1145 = vlaneseq
        %v1146 = vshrl.u32 %v1145, 7
        %v1147 = vsub.s32 %v1144, %v1146
        %v1148 = vrot.slane %v1134, %v1147
        %v1149 = vcombine.low %v1084, %v1100
        %v1150 = vcombine.high %v1084, %v1100
        %v1152 = vunpack.c.l.s4 1934713408
        %v1153 = vunpack.c.0.s8 %v1152
        %v1154 = vlaneseq
        %v1155 = vshrl.u32 %v1154, 7
        %v1156 = vsub.s32 %v1153, %v1155
        %v1157 = vrot.slane %v1149, %v1156
        %v1159 = vunpack.c.l.s4 1934713408
        %v1160 = vunpack.c.0.s8 %v1159
        %v1161 = vlaneseq
        %v1162 = vshrl.u32 %v1161, 7
        %v1163 = vsub.s32 %v1160, %v1162
        %v1164 = vrot.slane %v1150, %v1163
        %v1165 = vcombine.low %v1109, %v1125
        %v1166 = vcombine.high %v1109, %v1125
        %v1168 = vunpack.c.l.s4 1934713408
        %v1169 = vunpack.c.0.s8 %v1168
        %v1170 = vlaneseq
        %v1171 = vshrl.u32 %v1170, 7
        %v1172 = vsub.s32 %v1169, %v1171
        %v1173 = vrot.slane %v1165, %v1172
        %v1175 = vunpack.c.l.s4 1934713408
        %v1176 = vunpack.c.0.s8 %v1175
        %v1177 = vlaneseq
        %v1178 = vshrl.u32 %v1177, 7
        %v1179 = vsub.s32 %v1176, %v1178
        %v1180 = vrot.slane %v1166, %v1179
        %v1181 = vcombine.low %v1116, %v1132
        %v1182 = vcombine.high %v1116, %v1132
        %v1184 = vunpack.c.l.s4 1934713408
        %v1185 = vunpack.c.0.s8 %v1184
        %v1186 = vlaneseq
        %v1187 = vshrl.u32 %v1186, 7
        %v1188 = vsub.s32 %v1185, %v1187
        %v1189 = vrot.slane %v1181, %v1188
        %v1191 = vunpack.c.l.s4 1934713408
        %v1192 = vunpack.c.0.s8 %v1191
        %v1193 = vlaneseq
        %v1194 = vshrl.u32 %v1193, 7
        %v1195 = vsub.s32 %v1192, %v1194
        %v1196 = vrot.slane %v1182, %v1195
        %v1197 = vcombine.low %v1141, %v1173
        %v1198 = vcombine.high %v1141, %v1173
        %v1199 = vcombine.low %v1148, %v1180
        %v1200 = vcombine.high %v1148, %v1180
        %v1201 = vcombine.low %v1157, %v1189
        %v1202 = vcombine.high %v1157, %v1189
        %v1203 = vcombine.low %v1164, %v1196
        %v1204 = vcombine.high %v1164, %v1196
        %v1205 = vcombine.low %v245, %v247
        %v1206 = vcombine.high %v245, %v247
        %v1208 = vunpack.c.l.s4 1983009808
        %v1209 = vunpack.c.0.s8 %v1208
        %v1210 = vlaneseq
        %v1211 = vshrl.u32 %v1210, 7
        %v1212 = vsub.s32 %v1209, %v1211
        %v1213 = vrot.slane %v1205, %v1212
        %v1215 = vunpack.c.l.s4 1983009808
        %v1216 = vunpack.c.0.s8 %v1215
        %v1217 = vlaneseq
        %v1218 = vshrl.u32 %v1217, 7
        %v1219 = vsub.s32 %v1216, %v1218
        %v1220 = vrot.slane %v1206, %v1219
        %v1221 = vcombine.low %v246, %v248
        %v1222 = vcombine.high %v246, %v248
        %v1224 = vunpack.c.l.s4 1983009808
        %v1225 = vunpack.c.0.s8 %v1224
        %v1226 = vlaneseq
        %v1227 = vshrl.u32 %v1226, 7
        %v1228 = vsub.s32 %v1225, %v1227
        %v1229 = vrot.slane %v1221, %v1228
        %v1231 = vunpack.c.l.s4 1983009808
        %v1232 = vunpack.c.0.s8 %v1231
        %v1233 = vlaneseq
        %v1234 = vshrl.u32 %v1233, 7
        %v1235 = vsub.s32 %v1232, %v1234
        %v1236 = vrot.slane %v1222, %v1235
        %v1237 = vcombine.low %v249, %v251
        %v1238 = vcombine.high %v249, %v251
        %v1240 = vunpack.c.l.s4 1983009808
        %v1241 = vunpack.c.0.s8 %v1240
        %v1242 = vlaneseq
        %v1243 = vshrl.u32 %v1242, 7
        %v1244 = vsub.s32 %v1241, %v1243
        %v1245 = vrot.slane %v1237, %v1244
        %v1247 = vunpack.c.l.s4 1983009808
        %v1248 = vunpack.c.0.s8 %v1247
        %v1249 = vlaneseq
        %v1250 = vshrl.u32 %v1249, 7
        %v1251 = vsub.s32 %v1248, %v1250
        %v1252 = vrot.slane %v1238, %v1251
        %v1253 = vcombine.low %v250, %v252
        %v1254 = vcombine.high %v250, %v252
        %v1256 = vunpack.c.l.s4 1983009808
        %v1257 = vunpack.c.0.s8 %v1256
        %v1258 = vlaneseq
        %v1259 = vshrl.u32 %v1258, 7
        %v1260 = vsub.s32 %v1257, %v1259
        %v1261 = vrot.slane %v1253, %v1260
        %v1263 = vunpack.c.l.s4 1983009808
        %v1264 = vunpack.c.0.s8 %v1263
        %v1265 = vlaneseq
        %v1266 = vshrl.u32 %v1265, 7
        %v1267 = vsub.s32 %v1264, %v1266
        %v1268 = vrot.slane %v1254, %v1267
        %v1269 = vcombine.low %v1213, %v1229
        %v1270 = vcombine.high %v1213, %v1229
        %v1272 = vunpack.c.l.s4 1934713408
        %v1273 = vunpack.c.0.s8 %v1272
        %v1274 = vlaneseq
        %v1275 = vshrl.u32 %v1274, 7
        %v1276 = vsub.s32 %v1273, %v1275
        %v1277 = vrot.slane %v1269, %v1276
        %v1279 = vunpack.c.l.s4 1934713408
        %v1280 = vunpack.c.0.s8 %v1279
        %v1281 = vlaneseq
        %v1282 = vshrl.u32 %v1281, 7
        %v1283 = vsub.s32 %v1280, %v1282
        %v1284 = vrot.slane %v1270, %v1283
        %v1285 = vcombine.low %v1220, %v1236
        %v1286 = vcombine.high %v1220, %v1236
        %v1288 = vunpack.c.l.s4 1934713408
        %v1289 = vunpack.c.0.s8 %v1288
        %v1290 = vlaneseq
        %v1291 = vshrl.u32 %v1290, 7
        %v1292 = vsub.s32 %v1289, %v1291
        %v1293 = vrot.slane %v1285, %v1292
        %v1295 = vunpack.c.l.s4 1934713408
        %v1296 = vunpack.c.0.s8 %v1295
        %v1297 = vlaneseq
        %v1298 = vshrl.u32 %v1297, 7
        %v1299 = vsub.s32 %v1296, %v1298
        %v1300 = vrot.slane %v1286, %v1299
        %v1301 = vcombine.low %v1245, %v1261
        %v1302 = vcombine.high %v1245, %v1261
        %v1304 = vunpack.c.l.s4 1934713408
        %v1305 = vunpack.c.0.s8 %v1304
        %v1306 = vlaneseq
        %v1307 = vshrl.u32 %v1306, 7
        %v1308 = vsub.s32 %v1305, %v1307
        %v1309 = vrot.slane %v1301, %v1308
        %v1311 = vunpack.c.l.s4 1934713408
        %v1312 = vunpack.c.0.s8 %v1311
        %v1313 = vlaneseq
        %v1314 = vshrl.u32 %v1313, 7
        %v1315 = vsub.s32 %v1312, %v1314
        %v1316 = vrot.slane %v1302, %v1315
        %v1317 = vcombine.low %v1252, %v1268
        %v1318 = vcombine.high %v1252, %v1268
        %v1320 = vunpack.c.l.s4 1934713408
        %v1321 = vunpack.c.0.s8 %v1320
        %v1322 = vlaneseq
        %v1323 = vshrl.u32 %v1322, 7
        %v1324 = vsub.s32 %v1321, %v1323
        %v1325 = vrot.slane %v1317, %v1324
        %v1327 = vunpack.c.l.s4 1934713408
        %v1328 = vunpack.c.0.s8 %v1327
        %v1329 = vlaneseq
        %v1330 = vshrl.u32 %v1329, 7
        %v1331 = vsub.s32 %v1328, %v1330
        %v1332 = vrot.slane %v1318, %v1331
        %v1333 = vcombine.low %v1277, %v1309
        %v1334 = vcombine.high %v1277, %v1309
        %v1335 = vcombine.low %v1284, %v1316
        %v1336 = vcombine.high %v1284, %v1316
        %v1337 = vcombine.low %v1293, %v1325
        %v1338 = vcombine.high %v1293, %v1325
        %v1339 = vcombine.low %v1300, %v1332
        %v1340 = vcombine.high %v1300, %v1332
        %v1341 = vrot.slane %v381, 4
        %v1342 = vadd.f32 %v381, %v1341
        %v1343 = vrot.slane %v1342, 2
        %v1344 = vadd.f32 %v1342, %v1343
        %v1345 = vrot.slane %v1344, 1
        %v1346 = vadd.f32 %v1344, %v1345
        %v1347 = vrot.slane %v382, 4
        %v1348 = vadd.f32 %v382, %v1347
        %v1349 = vrot.slane %v1348, 2
        %v1350 = vadd.f32 %v1348, %v1349
        %v1351 = vrot.slane %v1350, 1
        %v1352 = vadd.f32 %v1350, %v1351
        %v1353 = vrot.slane %v383, 4
        %v1354 = vadd.f32 %v383, %v1353
        %v1355 = vrot.slane %v1354, 2
        %v1356 = vadd.f32 %v1354, %v1355
        %v1357 = vrot.slane %v1356, 1
        %v1358 = vadd.f32 %v1356, %v1357
        %v1359 = vrot.slane %v384, 4
        %v1360 = vadd.f32 %v384, %v1359
        %v1361 = vrot.slane %v1360, 2
        %v1362 = vadd.f32 %v1360, %v1361
        %v1363 = vrot.slane %v1362, 1
        %v1364 = vadd.f32 %v1362, %v1363
        %v1365 = vrot.slane %v385, 4
        %v1366 = vadd.f32 %v385, %v1365
        %v1367 = vrot.slane %v1366, 2
        %v1368 = vadd.f32 %v1366, %v1367
        %v1369 = vrot.slane %v1368, 1
        %v1370 = vadd.f32 %v1368, %v1369
        %v1371 = vrot.slane %v386, 4
        %v1372 = vadd.f32 %v386, %v1371
        %v1373 = vrot.slane %v1372, 2
        %v1374 = vadd.f32 %v1372, %v1373
        %v1375 = vrot.slane %v1374, 1
        %v1376 = vadd.f32 %v1374, %v1375
        %v1377 = vrot.slane %v387, 4
        %v1378 = vadd.f32 %v387, %v1377
        %v1379 = vrot.slane %v1378, 2
        %v1380 = vadd.f32 %v1378, %v1379
        %v1381 = vrot.slane %v1380, 1
        %v1382 = vadd.f32 %v1380, %v1381
        %v1383 = vrot.slane %v388, 4
        %v1384 = vadd.f32 %v388, %v1383
        %v1385 = vrot.slane %v1384, 2
        %v1386 = vadd.f32 %v1384, %v1385
        %v1387 = vrot.slane %v1386, 1
        %v1388 = vadd.f32 %v1386, %v1387
        %v1389 = vrot.slane %v517, 4
        %v1390 = vadd.f32 %v517, %v1389
        %v1391 = vrot.slane %v1390, 2
        %v1392 = vadd.f32 %v1390, %v1391
        %v1393 = vrot.slane %v1392, 1
        %v1394 = vadd.f32 %v1392, %v1393
        %v1395 = vrot.slane %v518, 4
        %v1396 = vadd.f32 %v518, %v1395
        %v1397 = vrot.slane %v1396, 2
        %v1398 = vadd.f32 %v1396, %v1397
        %v1399 = vrot.slane %v1398, 1
        %v1400 = vadd.f32 %v1398, %v1399
        %v1401 = vrot.slane %v519, 4
        %v1402 = vadd.f32 %v519, %v1401
        %v1403 = vrot.slane %v1402, 2
        %v1404 = vadd.f32 %v1402, %v1403
        %v1405 = vrot.slane %v1404, 1
        %v1406 = vadd.f32 %v1404, %v1405
        %v1407 = vrot.slane %v520, 4
        %v1408 = vadd.f32 %v520, %v1407
        %v1409 = vrot.slane %v1408, 2
        %v1410 = vadd.f32 %v1408, %v1409
        %v1411 = vrot.slane %v1410, 1
        %v1412 = vadd.f32 %v1410, %v1411
        %v1413 = vrot.slane %v521, 4
        %v1414 = vadd.f32 %v521, %v1413
        %v1415 = vrot.slane %v1414, 2
        %v1416 = vadd.f32 %v1414, %v1415
        %v1417 = vrot.slane %v1416, 1
        %v1418 = vadd.f32 %v1416, %v1417
        %v1419 = vrot.slane %v522, 4
        %v1420 = vadd.f32 %v522, %v1419
        %v1421 = vrot.slane %v1420, 2
        %v1422 = vadd.f32 %v1420, %v1421
        %v1423 = vrot.slane %v1422, 1
        %v1424 = vadd.f32 %v1422, %v1423
        %v1425 = vrot.slane %v523, 4
        %v1426 = vadd.f32 %v523, %v1425
        %v1427 = vrot.slane %v1426, 2
        %v1428 = vadd.f32 %v1426, %v1427
        %v1429 = vrot.slane %v1428, 1
        %v1430 = vadd.f32 %v1428, %v1429
        %v1431 = vrot.slane %v524, 4
        %v1432 = vadd.f32 %v524, %v1431
        %v1433 = vrot.slane %v1432, 2
        %v1434 = vadd.f32 %v1432, %v1433
        %v1435 = vrot.slane %v1434, 1
        %v1436 = vadd.f32 %v1434, %v1435
        %v1437 = vrot.slane %v653, 4
        %v1438 = vadd.f32 %v653, %v1437
        %v1439 = vrot.slane %v1438, 2
        %v1440 = vadd.f32 %v1438, %v1439
        %v1441 = vrot.slane %v1440, 1
        %v1442 = vadd.f32 %v1440, %v1441
        %v1443 = vrot.slane %v654, 4
        %v1444 = vadd.f32 %v654, %v1443
        %v1445 = vrot.slane %v1444, 2
        %v1446 = vadd.f32 %v1444, %v1445
        %v1447 = vrot.slane %v1446, 1
        %v1448 = vadd.f32 %v1446, %v1447
        %v1449 = vrot.slane %v655, 4
        %v1450 = vadd.f32 %v655, %v1449
        %v1451 = vrot.slane %v1450, 2
        %v1452 = vadd.f32 %v1450, %v1451
        %v1453 = vrot.slane %v1452, 1
        %v1454 = vadd.f32 %v1452, %v1453
        %v1455 = vrot.slane %v656, 4
        %v1456 = vadd.f32 %v656, %v1455
        %v1457 = vrot.slane %v1456, 2
        %v1458 = vadd.f32 %v1456, %v1457
        %v1459 = vrot.slane %v1458, 1
        %v1460 = vadd.f32 %v1458, %v1459
        %v1461 = vrot.slane %v657, 4
        %v1462 = vadd.f32 %v657, %v1461
        %v1463 = vrot.slane %v1462, 2
        %v1464 = vadd.f32 %v1462, %v1463
        %v1465 = vrot.slane %v1464, 1
        %v1466 = vadd.f32 %v1464, %v1465
        %v1467 = vrot.slane %v658, 4
        %v1468 = vadd.f32 %v658, %v1467
        %v1469 = vrot.slane %v1468, 2
        %v1470 = vadd.f32 %v1468, %v1469
        %v1471 = vrot.slane %v1470, 1
        %v1472 = vadd.f32 %v1470, %v1471
        %v1473 = vrot.slane %v659, 4
        %v1474 = vadd.f32 %v659, %v1473
        %v1475 = vrot.slane %v1474, 2
        %v1476 = vadd.f32 %v1474, %v1475
        %v1477 = vrot.slane %v1476, 1
        %v1478 = vadd.f32 %v1476, %v1477
        %v1479 = vrot.slane %v660, 4
        %v1480 = vadd.f32 %v660, %v1479
        %v1481 = vrot.slane %v1480, 2
        %v1482 = vadd.f32 %v1480, %v1481
        %v1483 = vrot.slane %v1482, 1
        %v1484 = vadd.f32 %v1482, %v1483
        %v1485 = vrot.slane %v789, 4
        %v1486 = vadd.f32 %v789, %v1485
        %v1487 = vrot.slane %v1486, 2
        %v1488 = vadd.f32 %v1486, %v1487
        %v1489 = vrot.slane %v1488, 1
        %v1490 = vadd.f32 %v1488, %v1489
        %v1491 = vrot.slane %v790, 4
        %v1492 = vadd.f32 %v790, %v1491
        %v1493 = vrot.slane %v1492, 2
        %v1494 = vadd.f32 %v1492, %v1493
        %v1495 = vrot.slane %v1494, 1
        %v1496 = vadd.f32 %v1494, %v1495
        %v1497 = vrot.slane %v791, 4
        %v1498 = vadd.f32 %v791, %v1497
        %v1499 = vrot.slane %v1498, 2
        %v1500 = vadd.f32 %v1498, %v1499
        %v1501 = vrot.slane %v1500, 1
        %v1502 = vadd.f32 %v1500, %v1501
        %v1503 = vrot.slane %v792, 4
        %v1504 = vadd.f32 %v792, %v1503
        %v1505 = vrot.slane %v1504, 2
        %v1506 = vadd.f32 %v1504, %v1505
        %v1507 = vrot.slane %v1506, 1
        %v1508 = vadd.f32 %v1506, %v1507
        %v1509 = vrot.slane %v793, 4
        %v1510 = vadd.f32 %v793, %v1509
        %v1511 = vrot.slane %v1510, 2
        %v1512 = vadd.f32 %v1510, %v1511
        %v1513 = vrot.slane %v1512, 1
        %v1514 = vadd.f32 %v1512, %v1513
        %v1515 = vrot.slane %v794, 4
        %v1516 = vadd.f32 %v794, %v1515
        %v1517 = vrot.slane %v1516, 2
        %v1518 = vadd.f32 %v1516, %v1517
        %v1519 = vrot.slane %v1518, 1
        %v1520 = vadd.f32 %v1518, %v1519
        %v1521 = vrot.slane %v795, 4
        %v1522 = vadd.f32 %v795, %v1521
        %v1523 = vrot.slane %v1522, 2
        %v1524 = vadd.f32 %v1522, %v1523
        %v1525 = vrot.slane %v1524, 1
        %v1526 = vadd.f32 %v1524, %v1525
        %v1527 = vrot.slane %v796, 4
        %v1528 = vadd.f32 %v796, %v1527
        %v1529 = vrot.slane %v1528, 2
        %v1530 = vadd.f32 %v1528, %v1529
        %v1531 = vrot.slane %v1530, 1
        %v1532 = vadd.f32 %v1530, %v1531
        %v1533 = vrot.slane %v925, 4
        %v1534 = vadd.f32 %v925, %v1533
        %v1535 = vrot.slane %v1534, 2
        %v1536 = vadd.f32 %v1534, %v1535
        %v1537 = vrot.slane %v1536, 1
        %v1538 = vadd.f32 %v1536, %v1537
        %v1539 = vrot.slane %v926, 4
        %v1540 = vadd.f32 %v926, %v1539
        %v1541 = vrot.slane %v1540, 2
        %v1542 = vadd.f32 %v1540, %v1541
        %v1543 = vrot.slane %v1542, 1
        %v1544 = vadd.f32 %v1542, %v1543
        %v1545 = vrot.slane %v927, 4
        %v1546 = vadd.f32 %v927, %v1545
        %v1547 = vrot.slane %v1546, 2
        %v1548 = vadd.f32 %v1546, %v1547
        %v1549 = vrot.slane %v1548, 1
        %v1550 = vadd.f32 %v1548, %v1549
        %v1551 = vrot.slane %v928, 4
        %v1552 = vadd.f32 %v928, %v1551
        %v1553 = vrot.slane %v1552, 2
        %v1554 = vadd.f32 %v1552, %v1553
        %v1555 = vrot.slane %v1554, 1
        %v1556 = vadd.f32 %v1554, %v1555
        %v1557 = vrot.slane %v929, 4
        %v1558 = vadd.f32 %v929, %v1557
        %v1559 = vrot.slane %v1558, 2
        %v1560 = vadd.f32 %v1558, %v1559
        %v1561 = vrot.slane %v1560, 1
        %v1562 = vadd.f32 %v1560, %v1561
        %v1563 = vrot.slane %v930, 4
        %v1564 = vadd.f32 %v930, %v1563
        %v1565 = vrot.slane %v1564, 2
        %v1566 = vadd.f32 %v1564, %v1565
        %v1567 = vrot.slane %v1566, 1
        %v1568 = vadd.f32 %v1566, %v1567
        %v1569 = vrot.slane %v931, 4
        %v1570 = vadd.f32 %v931, %v1569
        %v1571 = vrot.slane %v1570, 2
        %v1572 = vadd.f32 %v1570, %v1571
        %v1573 = vrot.slane %v1572, 1
        %v1574 = vadd.f32 %v1572, %v1573
        %v1575 = vrot.slane %v932, 4
        %v1576 = vadd.f32 %v932, %v1575
        %v1577 = vrot.slane %v1576, 2
        %v1578 = vadd.f32 %v1576, %v1577
        %v1579 = vrot.slane %v1578, 1
        %v1580 = vadd.f32 %v1578, %v1579
        %v1581 = vrot.slane %v1061, 4
        %v1582 = vadd.f32 %v1061, %v1581
        %v1583 = vrot.slane %v1582, 2
        %v1584 = vadd.f32 %v1582, %v1583
        %v1585 = vrot.slane %v1584, 1
        %v1586 = vadd.f32 %v1584, %v1585
        %v1587 = vrot.slane %v1062, 4
        %v1588 = vadd.f32 %v1062, %v1587
        %v1589 = vrot.slane %v1588, 2
        %v1590 = vadd.f32 %v1588, %v1589
        %v1591 = vrot.slane %v1590, 1
        %v1592 = vadd.f32 %v1590, %v1591
        %v1593 = vrot.slane %v1063, 4
        %v1594 = vadd.f32 %v1063, %v1593
        %v1595 = vrot.slane %v1594, 2
        %v1596 = vadd.f32 %v1594, %v1595
        %v1597 = vrot.slane %v1596, 1
        %v1598 = vadd.f32 %v1596, %v1597
        %v1599 = vrot.slane %v1064, 4
        %v1600 = vadd.f32 %v1064, %v1599
        %v1601 = vrot.slane %v1600, 2
        %v1602 = vadd.f32 %v1600, %v1601
        %v1603 = vrot.slane %v1602, 1
        %v1604 = vadd.f32 %v1602, %v1603
        %v1605 = vrot.slane %v1065, 4
        %v1606 = vadd.f32 %v1065, %v1605
        %v1607 = vrot.slane %v1606, 2
        %v1608 = vadd.f32 %v1606, %v1607
        %v1609 = vrot.slane %v1608, 1
        %v1610 = vadd.f32 %v1608, %v1609
        %v1611 = vrot.slane %v1066, 4
        %v1612 = vadd.f32 %v1066, %v1611
        %v1613 = vrot.slane %v1612, 2
        %v1614 = vadd.f32 %v1612, %v1613
        %v1615 = vrot.slane %v1614, 1
        %v1616 = vadd.f32 %v1614, %v1615
        %v1617 = vrot.slane %v1067, 4
        %v1618 = vadd.f32 %v1067, %v1617
        %v1619 = vrot.slane %v1618, 2
        %v1620 = vadd.f32 %v1618, %v1619
        %v1621 = vrot.slane %v1620, 1
        %v1622 = vadd.f32 %v1620, %v1621
        %v1623 = vrot.slane %v1068, 4
        %v1624 = vadd.f32 %v1068, %v1623
        %v1625 = vrot.slane %v1624, 2
        %v1626 = vadd.f32 %v1624, %v1625
        %v1627 = vrot.slane %v1626, 1
        %v1628 = vadd.f32 %v1626, %v1627
        %v1629 = vrot.slane %v1197, 4
        %v1630 = vadd.f32 %v1197, %v1629
        %v1631 = vrot.slane %v1630, 2
        %v1632 = vadd.f32 %v1630, %v1631
        %v1633 = vrot.slane %v1632, 1
        %v1634 = vadd.f32 %v1632, %v1633
        %v1635 = vrot.slane %v1198, 4
        %v1636 = vadd.f32 %v1198, %v1635
        %v1637 = vrot.slane %v1636, 2
        %v1638 = vadd.f32 %v1636, %v1637
        %v1639 = vrot.slane %v1638, 1
        %v1640 = vadd.f32 %v1638, %v1639
        %v1641 = vrot.slane %v1199, 4
        %v1642 = vadd.f32 %v1199, %v1641
        %v1643 = vrot.slane %v1642, 2
        %v1644 = vadd.f32 %v1642, %v1643
        %v1645 = vrot.slane %v1644, 1
        %v1646 = vadd.f32 %v1644, %v1645
        %v1647 = vrot.slane %v1200, 4
        %v1648 = vadd.f32 %v1200, %v1647
        %v1649 = vrot.slane %v1648, 2
        %v1650 = vadd.f32 %v1648, %v1649
        %v1651 = vrot.slane %v1650, 1
        %v1652 = vadd.f32 %v1650, %v1651
        %v1653 = vrot.slane %v1201, 4
        %v1654 = vadd.f32 %v1201, %v1653
        %v1655 = vrot.slane %v1654, 2
        %v1656 = vadd.f32 %v1654, %v1655
        %v1657 = vrot.slane %v1656, 1
        %v1658 = vadd.f32 %v1656, %v1657
        %v1659 = vrot.slane %v1202, 4
        %v1660 = vadd.f32 %v1202, %v1659
        %v1661 = vrot.slane %v1660, 2
        %v1662 = vadd.f32 %v1660, %v1661
        %v1663 = vrot.slane %v1662, 1
        %v1664 = vadd.f32 %v1662, %v1663
        %v1665 = vrot.slane %v1203, 4
        %v1666 = vadd.f32 %v1203, %v1665
        %v1667 = vrot.slane %v1666, 2
        %v1668 = vadd.f32 %v1666, %v1667
        %v1669 = vrot.slane %v1668, 1
        %v1670 = vadd.f32 %v1668, %v1669
        %v1671 = vrot.slane %v1204, 4
        %v1672 = vadd.f32 %v1204, %v1671
        %v1673 = vrot.slane %v1672, 2
        %v1674 = vadd.f32 %v1672, %v1673
        %v1675 = vrot.slane %v1674, 1
        %v1676 = vadd.f32 %v1674, %v1675
        %v1677 = vrot.slane %v1333, 4
        %v1678 = vadd.f32 %v1333, %v1677
        %v1679 = vrot.slane %v1678, 2
        %v1680 = vadd.f32 %v1678, %v1679
        %v1681 = vrot.slane %v1680, 1
        %v1682 = vadd.f32 %v1680, %v1681
        %v1683 = vrot.slane %v1334, 4
        %v1684 = vadd.f32 %v1334, %v1683
        %v1685 = vrot.slane %v1684, 2
        %v1686 = vadd.f32 %v1684, %v1685
        %v1687 = vrot.slane %v1686, 1
        %v1688 = vadd.f32 %v1686, %v1687
        %v1689 = vrot.slane %v1335, 4
        %v1690 = vadd.f32 %v1335, %v1689
        %v1691 = vrot.slane %v1690, 2
        %v1692 = vadd.f32 %v1690, %v1691
        %v1693 = vrot.slane %v1692, 1
        %v1694 = vadd.f32 %v1692, %v1693
        %v1695 = vrot.slane %v1336, 4
        %v1696 = vadd.f32 %v1336, %v1695
        %v1697 = vrot.slane %v1696, 2
        %v1698 = vadd.f32 %v1696, %v1697
        %v1699 = vrot.slane %v1698, 1
        %v1700 = vadd.f32 %v1698, %v1699
        %v1701 = vrot.slane %v1337, 4
        %v1702 = vadd.f32 %v1337, %v1701
        %v1703 = vrot.slane %v1702, 2
        %v1704 = vadd.f32 %v1702, %v1703
        %v1705 = vrot.slane %v1704, 1
        %v1706 = vadd.f32 %v1704, %v1705
        %v1707 = vrot.slane %v1338, 4
        %v1708 = vadd.f32 %v1338, %v1707
        %v1709 = vrot.slane %v1708, 2
        %v1710 = vadd.f32 %v1708, %v1709
        %v1711 = vrot.slane %v1710, 1
        %v1712 = vadd.f32 %v1710, %v1711
        %v1713 = vrot.slane %v1339, 4
        %v1714 = vadd.f32 %v1339, %v1713
        %v1715 = vrot.slane %v1714, 2
        %v1716 = vadd.f32 %v1714, %v1715
        %v1717 = vrot.slane %v1716, 1
        %v1718 = vadd.f32 %v1716, %v1717
        %v1719 = vrot.slane %v1340, 4
        %v1720 = vadd.f32 %v1340, %v1719
        %v1721 = vrot.slane %v1720, 2
        %v1722 = vadd.f32 %v1720, %v1721
        %v1723 = vrot.slane %v1722, 1
        %v1724 = vadd.f32 %v1722, %v1723
        %vm1789 = vcmask 1041409
        %v1790 = vsel %vm1789, %v1352, %v1346
        %vm1791 = vcmask 1042434
        %v1792 = vsel %vm1791, %v1358, %v1790
        %vm1793 = vcmask 1043459
        %v1794 = vsel %vm1793, %v1364, %v1792
        %vm1795 = vcmask 1044484
        %v1796 = vsel %vm1795, %v1370, %v1794
        %vm1797 = vcmask 1045509
        %v1798 = vsel %vm1797, %v1376, %v1796
        %vm1799 = vcmask 1046534
        %v1800 = vsel %vm1799, %v1382, %v1798
        %vm1801 = vcmask 1047559
        %v1802 = vsel %vm1801, %v1388, %v1800
        %v1803 = vsel %vm1789, %v1400, %v1394
        %v1804 = vsel %vm1791, %v1406, %v1803
        %v1805 = vsel %vm1793, %v1412, %v1804
        %v1806 = vsel %vm1795, %v1418, %v1805
        %v1807 = vsel %vm1797, %v1424, %v1806
        %v1808 = vsel %vm1799, %v1430, %v1807
        %v1809 = vsel %vm1801, %v1436, %v1808
        %v1810 = vsel %vm1789, %v1448, %v1442
        %v1811 = vsel %vm1791, %v1454, %v1810
        %v1812 = vsel %vm1793, %v1460, %v1811
        %v1813 = vsel %vm1795, %v1466, %v1812
        %v1814 = vsel %vm1797, %v1472, %v1813
        %v1815 = vsel %vm1799, %v1478, %v1814
        %v1816 = vsel %vm1801, %v1484, %v1815
        %v1817 = vsel %vm1789, %v1496, %v1490
        %v1818 = vsel %vm1791, %v1502, %v1817
        %v1819 = vsel %vm1793, %v1508, %v1818
        %v1820 = vsel %vm1795, %v1514, %v1819
        %v1821 = vsel %vm1797, %v1520, %v1820
        %v1822 = vsel %vm1799, %v1526, %v1821
        %v1823 = vsel %vm1801, %v1532, %v1822
        %v1824 = vsel %vm1789, %v1544, %v1538
        %v1825 = vsel %vm1791, %v1550, %v1824
        %v1826 = vsel %vm1793, %v1556, %v1825
        %v1827 = vsel %vm1795, %v1562, %v1826
        %v1828 = vsel %vm1797, %v1568, %v1827
        %v1829 = vsel %vm1799, %v1574, %v1828
        %v1830 = vsel %vm1801, %v1580, %v1829
        %v1831 = vsel %vm1789, %v1592, %v1586
        %v1832 = vsel %vm1791, %v1598, %v1831
        %v1833 = vsel %vm1793, %v1604, %v1832
        %v1834 = vsel %vm1795, %v1610, %v1833
        %v1835 = vsel %vm1797, %v1616, %v1834
        %v1836 = vsel %vm1799, %v1622, %v1835
        %v1837 = vsel %vm1801, %v1628, %v1836
        %v1838 = vsel %vm1789, %v1640, %v1634
        %v1839 = vsel %vm1791, %v1646, %v1838
        %v1840 = vsel %vm1793, %v1652, %v1839
        %v1841 = vsel %vm1795, %v1658, %v1840
        %v1842 = vsel %vm1797, %v1664, %v1841
        %v1843 = vsel %vm1799, %v1670, %v1842
        %v1844 = vsel %vm1801, %v1676, %v1843
        %v1845 = vsel %vm1789, %v1688, %v1682
        %v1846 = vsel %vm1791, %v1694, %v1845
        %v1847 = vsel %vm1793, %v1700, %v1846
        %v1848 = vsel %vm1795, %v1706, %v1847
        %v1849 = vsel %vm1797, %v1712, %v1848
        %v1850 = vsel %vm1799, %v1718, %v1849
        %v1851 = vsel %vm1801, %v1724, %v1850
        %1860 = vadd.xlane.f32.xlu0 %v1802
        %v1861 = vpop.xlane.xlu0 %1860
        %1862 = vadd.xlane.f32.xlu0 %v1809
        %v1863 = vpop.xlane.xlu0 %1862
        %1864 = vadd.xlane.f32.xlu0 %v1816
        %v1865 = vpop.xlane.xlu0 %1864
        %1866 = vadd.xlane.f32.xlu0 %v1823
        %v1867 = vpop.xlane.xlu0 %1866
        %1868 = vadd.xlane.f32.xlu0 %v1830
        %v1869 = vpop.xlane.xlu0 %1868
        %1870 = vadd.xlane.f32.xlu0 %v1837
        %v1871 = vpop.xlane.xlu0 %1870
        %1872 = vadd.xlane.f32.xlu0 %v1844
        %v1873 = vpop.xlane.xlu0 %1872
        %1874 = vadd.xlane.f32.xlu0 %v1851
        %v1875 = vpop.xlane.xlu0 %1874
        %v1876 = vrot.slane %v381, 4
        %v1877 = vmax.f32 %v381, %v1876
        %v1878 = vrot.slane %v1877, 2
        %v1879 = vmax.f32 %v1877, %v1878
        %v1880 = vrot.slane %v1879, 1
        %v1881 = vmax.f32 %v1879, %v1880
        %v1882 = vrot.slane %v382, 4
        %v1883 = vmax.f32 %v382, %v1882
        %v1884 = vrot.slane %v1883, 2
        %v1885 = vmax.f32 %v1883, %v1884
        %v1886 = vrot.slane %v1885, 1
        %v1887 = vmax.f32 %v1885, %v1886
        %v1888 = vrot.slane %v383, 4
        %v1889 = vmax.f32 %v383, %v1888
        %v1890 = vrot.slane %v1889, 2
        %v1891 = vmax.f32 %v1889, %v1890
        %v1892 = vrot.slane %v1891, 1
        %v1893 = vmax.f32 %v1891, %v1892
        %v1894 = vrot.slane %v384, 4
        %v1895 = vmax.f32 %v384, %v1894
        %v1896 = vrot.slane %v1895, 2
        %v1897 = vmax.f32 %v1895, %v1896
        %v1898 = vrot.slane %v1897, 1
        %v1899 = vmax.f32 %v1897, %v1898
        %v1900 = vrot.slane %v385, 4
        %v1901 = vmax.f32 %v385, %v1900
        %v1902 = vrot.slane %v1901, 2
        %v1903 = vmax.f32 %v1901, %v1902
        %v1904 = vrot.slane %v1903, 1
        %v1905 = vmax.f32 %v1903, %v1904
        %v1906 = vrot.slane %v386, 4
        %v1907 = vmax.f32 %v386, %v1906
        %v1908 = vrot.slane %v1907, 2
        %v1909 = vmax.f32 %v1907, %v1908
        %v1910 = vrot.slane %v1909, 1
        %v1911 = vmax.f32 %v1909, %v1910
        %v1912 = vrot.slane %v387, 4
        %v1913 = vmax.f32 %v387, %v1912
        %v1914 = vrot.slane %v1913, 2
        %v1915 = vmax.f32 %v1913, %v1914
        %v1916 = vrot.slane %v1915, 1
        %v1917 = vmax.f32 %v1915, %v1916
        %v1918 = vrot.slane %v388, 4
        %v1919 = vmax.f32 %v388, %v1918
        %v1920 = vrot.slane %v1919, 2
        %v1921 = vmax.f32 %v1919, %v1920
        %v1922 = vrot.slane %v1921, 1
        %v1923 = vmax.f32 %v1921, %v1922
        %v1924 = vrot.slane %v517, 4
        %v1925 = vmax.f32 %v517, %v1924
        %v1926 = vrot.slane %v1925, 2
        %v1927 = vmax.f32 %v1925, %v1926
        %v1928 = vrot.slane %v1927, 1
        %v1929 = vmax.f32 %v1927, %v1928
        %v1930 = vrot.slane %v518, 4
        %v1931 = vmax.f32 %v518, %v1930
        %v1932 = vrot.slane %v1931, 2
        %v1933 = vmax.f32 %v1931, %v1932
        %v1934 = vrot.slane %v1933, 1
        %v1935 = vmax.f32 %v1933, %v1934
        %v1936 = vrot.slane %v519, 4
        %v1937 = vmax.f32 %v519, %v1936
        %v1938 = vrot.slane %v1937, 2
        %v1939 = vmax.f32 %v1937, %v1938
        %v1940 = vrot.slane %v1939, 1
        %v1941 = vmax.f32 %v1939, %v1940
        %v1942 = vrot.slane %v520, 4
        %v1943 = vmax.f32 %v520, %v1942
        %v1944 = vrot.slane %v1943, 2
        %v1945 = vmax.f32 %v1943, %v1944
        %v1946 = vrot.slane %v1945, 1
        %v1947 = vmax.f32 %v1945, %v1946
        %v1948 = vrot.slane %v521, 4
        %v1949 = vmax.f32 %v521, %v1948
        %v1950 = vrot.slane %v1949, 2
        %v1951 = vmax.f32 %v1949, %v1950
        %v1952 = vrot.slane %v1951, 1
        %v1953 = vmax.f32 %v1951, %v1952
        %v1954 = vrot.slane %v522, 4
        %v1955 = vmax.f32 %v522, %v1954
        %v1956 = vrot.slane %v1955, 2
        %v1957 = vmax.f32 %v1955, %v1956
        %v1958 = vrot.slane %v1957, 1
        %v1959 = vmax.f32 %v1957, %v1958
        %v1960 = vrot.slane %v523, 4
        %v1961 = vmax.f32 %v523, %v1960
        %v1962 = vrot.slane %v1961, 2
        %v1963 = vmax.f32 %v1961, %v1962
        %v1964 = vrot.slane %v1963, 1
        %v1965 = vmax.f32 %v1963, %v1964
        %v1966 = vrot.slane %v524, 4
        %v1967 = vmax.f32 %v524, %v1966
        %v1968 = vrot.slane %v1967, 2
        %v1969 = vmax.f32 %v1967, %v1968
        %v1970 = vrot.slane %v1969, 1
        %v1971 = vmax.f32 %v1969, %v1970
        %v1972 = vrot.slane %v653, 4
        %v1973 = vmax.f32 %v653, %v1972
        %v1974 = vrot.slane %v1973, 2
        %v1975 = vmax.f32 %v1973, %v1974
        %v1976 = vrot.slane %v1975, 1
        %v1977 = vmax.f32 %v1975, %v1976
        %v1978 = vrot.slane %v654, 4
        %v1979 = vmax.f32 %v654, %v1978
        %v1980 = vrot.slane %v1979, 2
        %v1981 = vmax.f32 %v1979, %v1980
        %v1982 = vrot.slane %v1981, 1
        %v1983 = vmax.f32 %v1981, %v1982
        %v1984 = vrot.slane %v655, 4
        %v1985 = vmax.f32 %v655, %v1984
        %v1986 = vrot.slane %v1985, 2
        %v1987 = vmax.f32 %v1985, %v1986
        %v1988 = vrot.slane %v1987, 1
        %v1989 = vmax.f32 %v1987, %v1988
        %v1990 = vrot.slane %v656, 4
        %v1991 = vmax.f32 %v656, %v1990
        %v1992 = vrot.slane %v1991, 2
        %v1993 = vmax.f32 %v1991, %v1992
        %v1994 = vrot.slane %v1993, 1
        %v1995 = vmax.f32 %v1993, %v1994
        %v1996 = vrot.slane %v657, 4
        %v1997 = vmax.f32 %v657, %v1996
        %v1998 = vrot.slane %v1997, 2
        %v1999 = vmax.f32 %v1997, %v1998
        %v2000 = vrot.slane %v1999, 1
        %v2001 = vmax.f32 %v1999, %v2000
        %v2002 = vrot.slane %v658, 4
        %v2003 = vmax.f32 %v658, %v2002
        %v2004 = vrot.slane %v2003, 2
        %v2005 = vmax.f32 %v2003, %v2004
        %v2006 = vrot.slane %v2005, 1
        %v2007 = vmax.f32 %v2005, %v2006
        %v2008 = vrot.slane %v659, 4
        %v2009 = vmax.f32 %v659, %v2008
        %v2010 = vrot.slane %v2009, 2
        %v2011 = vmax.f32 %v2009, %v2010
        %v2012 = vrot.slane %v2011, 1
        %v2013 = vmax.f32 %v2011, %v2012
        %v2014 = vrot.slane %v660, 4
        %v2015 = vmax.f32 %v660, %v2014
        %v2016 = vrot.slane %v2015, 2
        %v2017 = vmax.f32 %v2015, %v2016
        %v2018 = vrot.slane %v2017, 1
        %v2019 = vmax.f32 %v2017, %v2018
        %v2020 = vrot.slane %v789, 4
        %v2021 = vmax.f32 %v789, %v2020
        %v2022 = vrot.slane %v2021, 2
        %v2023 = vmax.f32 %v2021, %v2022
        %v2024 = vrot.slane %v2023, 1
        %v2025 = vmax.f32 %v2023, %v2024
        %v2026 = vrot.slane %v790, 4
        %v2027 = vmax.f32 %v790, %v2026
        %v2028 = vrot.slane %v2027, 2
        %v2029 = vmax.f32 %v2027, %v2028
        %v2030 = vrot.slane %v2029, 1
        %v2031 = vmax.f32 %v2029, %v2030
        %v2032 = vrot.slane %v791, 4
        %v2033 = vmax.f32 %v791, %v2032
        %v2034 = vrot.slane %v2033, 2
        %v2035 = vmax.f32 %v2033, %v2034
        %v2036 = vrot.slane %v2035, 1
        %v2037 = vmax.f32 %v2035, %v2036
        %v2038 = vrot.slane %v792, 4
        %v2039 = vmax.f32 %v792, %v2038
        %v2040 = vrot.slane %v2039, 2
        %v2041 = vmax.f32 %v2039, %v2040
        %v2042 = vrot.slane %v2041, 1
        %v2043 = vmax.f32 %v2041, %v2042
        %v2044 = vrot.slane %v793, 4
        %v2045 = vmax.f32 %v793, %v2044
        %v2046 = vrot.slane %v2045, 2
        %v2047 = vmax.f32 %v2045, %v2046
        %v2048 = vrot.slane %v2047, 1
        %v2049 = vmax.f32 %v2047, %v2048
        %v2050 = vrot.slane %v794, 4
        %v2051 = vmax.f32 %v794, %v2050
        %v2052 = vrot.slane %v2051, 2
        %v2053 = vmax.f32 %v2051, %v2052
        %v2054 = vrot.slane %v2053, 1
        %v2055 = vmax.f32 %v2053, %v2054
        %v2056 = vrot.slane %v795, 4
        %v2057 = vmax.f32 %v795, %v2056
        %v2058 = vrot.slane %v2057, 2
        %v2059 = vmax.f32 %v2057, %v2058
        %v2060 = vrot.slane %v2059, 1
        %v2061 = vmax.f32 %v2059, %v2060
        %v2062 = vrot.slane %v796, 4
        %v2063 = vmax.f32 %v796, %v2062
        %v2064 = vrot.slane %v2063, 2
        %v2065 = vmax.f32 %v2063, %v2064
        %v2066 = vrot.slane %v2065, 1
        %v2067 = vmax.f32 %v2065, %v2066
        %v2068 = vrot.slane %v925, 4
        %v2069 = vmax.f32 %v925, %v2068
        %v2070 = vrot.slane %v2069, 2
        %v2071 = vmax.f32 %v2069, %v2070
        %v2072 = vrot.slane %v2071, 1
        %v2073 = vmax.f32 %v2071, %v2072
        %v2074 = vrot.slane %v926, 4
        %v2075 = vmax.f32 %v926, %v2074
        %v2076 = vrot.slane %v2075, 2
        %v2077 = vmax.f32 %v2075, %v2076
        %v2078 = vrot.slane %v2077, 1
        %v2079 = vmax.f32 %v2077, %v2078
        %v2080 = vrot.slane %v927, 4
        %v2081 = vmax.f32 %v927, %v2080
        %v2082 = vrot.slane %v2081, 2
        %v2083 = vmax.f32 %v2081, %v2082
        %v2084 = vrot.slane %v2083, 1
        %v2085 = vmax.f32 %v2083, %v2084
        %v2086 = vrot.slane %v928, 4
        %v2087 = vmax.f32 %v928, %v2086
        %v2088 = vrot.slane %v2087, 2
        %v2089 = vmax.f32 %v2087, %v2088
        %v2090 = vrot.slane %v2089, 1
        %v2091 = vmax.f32 %v2089, %v2090
        %v2092 = vrot.slane %v929, 4
        %v2093 = vmax.f32 %v929, %v2092
        %v2094 = vrot.slane %v2093, 2
        %v2095 = vmax.f32 %v2093, %v2094
        %v2096 = vrot.slane %v2095, 1
        %v2097 = vmax.f32 %v2095, %v2096
        %v2098 = vrot.slane %v930, 4
        %v2099 = vmax.f32 %v930, %v2098
        %v2100 = vrot.slane %v2099, 2
        %v2101 = vmax.f32 %v2099, %v2100
        %v2102 = vrot.slane %v2101, 1
        %v2103 = vmax.f32 %v2101, %v2102
        %v2104 = vrot.slane %v931, 4
        %v2105 = vmax.f32 %v931, %v2104
        %v2106 = vrot.slane %v2105, 2
        %v2107 = vmax.f32 %v2105, %v2106
        %v2108 = vrot.slane %v2107, 1
        %v2109 = vmax.f32 %v2107, %v2108
        %v2110 = vrot.slane %v932, 4
        %v2111 = vmax.f32 %v932, %v2110
        %v2112 = vrot.slane %v2111, 2
        %v2113 = vmax.f32 %v2111, %v2112
        %v2114 = vrot.slane %v2113, 1
        %v2115 = vmax.f32 %v2113, %v2114
        %v2116 = vrot.slane %v1061, 4
        %v2117 = vmax.f32 %v1061, %v2116
        %v2118 = vrot.slane %v2117, 2
        %v2119 = vmax.f32 %v2117, %v2118
        %v2120 = vrot.slane %v2119, 1
        %v2121 = vmax.f32 %v2119, %v2120
        %v2122 = vrot.slane %v1062, 4
        %v2123 = vmax.f32 %v1062, %v2122
        %v2124 = vrot.slane %v2123, 2
        %v2125 = vmax.f32 %v2123, %v2124
        %v2126 = vrot.slane %v2125, 1
        %v2127 = vmax.f32 %v2125, %v2126
        %v2128 = vrot.slane %v1063, 4
        %v2129 = vmax.f32 %v1063, %v2128
        %v2130 = vrot.slane %v2129, 2
        %v2131 = vmax.f32 %v2129, %v2130
        %v2132 = vrot.slane %v2131, 1
        %v2133 = vmax.f32 %v2131, %v2132
        %v2134 = vrot.slane %v1064, 4
        %v2135 = vmax.f32 %v1064, %v2134
        %v2136 = vrot.slane %v2135, 2
        %v2137 = vmax.f32 %v2135, %v2136
        %v2138 = vrot.slane %v2137, 1
        %v2139 = vmax.f32 %v2137, %v2138
        %v2140 = vrot.slane %v1065, 4
        %v2141 = vmax.f32 %v1065, %v2140
        %v2142 = vrot.slane %v2141, 2
        %v2143 = vmax.f32 %v2141, %v2142
        %v2144 = vrot.slane %v2143, 1
        %v2145 = vmax.f32 %v2143, %v2144
        %v2146 = vrot.slane %v1066, 4
        %v2147 = vmax.f32 %v1066, %v2146
        %v2148 = vrot.slane %v2147, 2
        %v2149 = vmax.f32 %v2147, %v2148
        %v2150 = vrot.slane %v2149, 1
        %v2151 = vmax.f32 %v2149, %v2150
        %v2152 = vrot.slane %v1067, 4
        %v2153 = vmax.f32 %v1067, %v2152
        %v2154 = vrot.slane %v2153, 2
        %v2155 = vmax.f32 %v2153, %v2154
        %v2156 = vrot.slane %v2155, 1
        %v2157 = vmax.f32 %v2155, %v2156
        %v2158 = vrot.slane %v1068, 4
        %v2159 = vmax.f32 %v1068, %v2158
        %v2160 = vrot.slane %v2159, 2
        %v2161 = vmax.f32 %v2159, %v2160
        %v2162 = vrot.slane %v2161, 1
        %v2163 = vmax.f32 %v2161, %v2162
        %v2164 = vrot.slane %v1197, 4
        %v2165 = vmax.f32 %v1197, %v2164
        %v2166 = vrot.slane %v2165, 2
        %v2167 = vmax.f32 %v2165, %v2166
        %v2168 = vrot.slane %v2167, 1
        %v2169 = vmax.f32 %v2167, %v2168
        %v2170 = vrot.slane %v1198, 4
        %v2171 = vmax.f32 %v1198, %v2170
        %v2172 = vrot.slane %v2171, 2
        %v2173 = vmax.f32 %v2171, %v2172
        %v2174 = vrot.slane %v2173, 1
        %v2175 = vmax.f32 %v2173, %v2174
        %v2176 = vrot.slane %v1199, 4
        %v2177 = vmax.f32 %v1199, %v2176
        %v2178 = vrot.slane %v2177, 2
        %v2179 = vmax.f32 %v2177, %v2178
        %v2180 = vrot.slane %v2179, 1
        %v2181 = vmax.f32 %v2179, %v2180
        %v2182 = vrot.slane %v1200, 4
        %v2183 = vmax.f32 %v1200, %v2182
        %v2184 = vrot.slane %v2183, 2
        %v2185 = vmax.f32 %v2183, %v2184
        %v2186 = vrot.slane %v2185, 1
        %v2187 = vmax.f32 %v2185, %v2186
        %v2188 = vrot.slane %v1201, 4
        %v2189 = vmax.f32 %v1201, %v2188
        %v2190 = vrot.slane %v2189, 2
        %v2191 = vmax.f32 %v2189, %v2190
        %v2192 = vrot.slane %v2191, 1
        %v2193 = vmax.f32 %v2191, %v2192
        %v2194 = vrot.slane %v1202, 4
        %v2195 = vmax.f32 %v1202, %v2194
        %v2196 = vrot.slane %v2195, 2
        %v2197 = vmax.f32 %v2195, %v2196
        %v2198 = vrot.slane %v2197, 1
        %v2199 = vmax.f32 %v2197, %v2198
        %v2200 = vrot.slane %v1203, 4
        %v2201 = vmax.f32 %v1203, %v2200
        %v2202 = vrot.slane %v2201, 2
        %v2203 = vmax.f32 %v2201, %v2202
        %v2204 = vrot.slane %v2203, 1
        %v2205 = vmax.f32 %v2203, %v2204
        %v2206 = vrot.slane %v1204, 4
        %v2207 = vmax.f32 %v1204, %v2206
        %v2208 = vrot.slane %v2207, 2
        %v2209 = vmax.f32 %v2207, %v2208
        %v2210 = vrot.slane %v2209, 1
        %v2211 = vmax.f32 %v2209, %v2210
        %v2212 = vrot.slane %v1333, 4
        %v2213 = vmax.f32 %v1333, %v2212
        %v2214 = vrot.slane %v2213, 2
        %v2215 = vmax.f32 %v2213, %v2214
        %v2216 = vrot.slane %v2215, 1
        %v2217 = vmax.f32 %v2215, %v2216
        %v2218 = vrot.slane %v1334, 4
        %v2219 = vmax.f32 %v1334, %v2218
        %v2220 = vrot.slane %v2219, 2
        %v2221 = vmax.f32 %v2219, %v2220
        %v2222 = vrot.slane %v2221, 1
        %v2223 = vmax.f32 %v2221, %v2222
        %v2224 = vrot.slane %v1335, 4
        %v2225 = vmax.f32 %v1335, %v2224
        %v2226 = vrot.slane %v2225, 2
        %v2227 = vmax.f32 %v2225, %v2226
        %v2228 = vrot.slane %v2227, 1
        %v2229 = vmax.f32 %v2227, %v2228
        %v2230 = vrot.slane %v1336, 4
        %v2231 = vmax.f32 %v1336, %v2230
        %v2232 = vrot.slane %v2231, 2
        %v2233 = vmax.f32 %v2231, %v2232
        %v2234 = vrot.slane %v2233, 1
        %v2235 = vmax.f32 %v2233, %v2234
        %v2236 = vrot.slane %v1337, 4
        %v2237 = vmax.f32 %v1337, %v2236
        %v2238 = vrot.slane %v2237, 2
        %v2239 = vmax.f32 %v2237, %v2238
        %v2240 = vrot.slane %v2239, 1
        %v2241 = vmax.f32 %v2239, %v2240
        %v2242 = vrot.slane %v1338, 4
        %v2243 = vmax.f32 %v1338, %v2242
        %v2244 = vrot.slane %v2243, 2
        %v2245 = vmax.f32 %v2243, %v2244
        %v2246 = vrot.slane %v2245, 1
        %v2247 = vmax.f32 %v2245, %v2246
        %v2248 = vrot.slane %v1339, 4
        %v2249 = vmax.f32 %v1339, %v2248
        %v2250 = vrot.slane %v2249, 2
        %v2251 = vmax.f32 %v2249, %v2250
        %v2252 = vrot.slane %v2251, 1
        %v2253 = vmax.f32 %v2251, %v2252
        %v2254 = vrot.slane %v1340, 4
        %v2255 = vmax.f32 %v1340, %v2254
        %v2256 = vrot.slane %v2255, 2
        %v2257 = vmax.f32 %v2255, %v2256
        %v2258 = vrot.slane %v2257, 1
        %v2259 = vmax.f32 %v2257, %v2258
        %v2324 = vsel %vm1789, %v1887, %v1881
        %v2325 = vsel %vm1791, %v1893, %v2324
        %v2326 = vsel %vm1793, %v1899, %v2325
        %v2327 = vsel %vm1795, %v1905, %v2326
        %v2328 = vsel %vm1797, %v1911, %v2327
        %v2329 = vsel %vm1799, %v1917, %v2328
        %v2330 = vsel %vm1801, %v1923, %v2329
        %v2331 = vsel %vm1789, %v1935, %v1929
        %v2332 = vsel %vm1791, %v1941, %v2331
        %v2333 = vsel %vm1793, %v1947, %v2332
        %v2334 = vsel %vm1795, %v1953, %v2333
        %v2335 = vsel %vm1797, %v1959, %v2334
        %v2336 = vsel %vm1799, %v1965, %v2335
        %v2337 = vsel %vm1801, %v1971, %v2336
        %v2338 = vsel %vm1789, %v1983, %v1977
        %v2339 = vsel %vm1791, %v1989, %v2338
        %v2340 = vsel %vm1793, %v1995, %v2339
        %v2341 = vsel %vm1795, %v2001, %v2340
        %v2342 = vsel %vm1797, %v2007, %v2341
        %v2343 = vsel %vm1799, %v2013, %v2342
        %v2344 = vsel %vm1801, %v2019, %v2343
        %v2345 = vsel %vm1789, %v2031, %v2025
        %v2346 = vsel %vm1791, %v2037, %v2345
        %v2347 = vsel %vm1793, %v2043, %v2346
        %v2348 = vsel %vm1795, %v2049, %v2347
        %v2349 = vsel %vm1797, %v2055, %v2348
        %v2350 = vsel %vm1799, %v2061, %v2349
        %v2351 = vsel %vm1801, %v2067, %v2350
        %v2352 = vsel %vm1789, %v2079, %v2073
        %v2353 = vsel %vm1791, %v2085, %v2352
        %v2354 = vsel %vm1793, %v2091, %v2353
        %v2355 = vsel %vm1795, %v2097, %v2354
        %v2356 = vsel %vm1797, %v2103, %v2355
        %v2357 = vsel %vm1799, %v2109, %v2356
        %v2358 = vsel %vm1801, %v2115, %v2357
        %v2359 = vsel %vm1789, %v2127, %v2121
        %v2360 = vsel %vm1791, %v2133, %v2359
        %v2361 = vsel %vm1793, %v2139, %v2360
        %v2362 = vsel %vm1795, %v2145, %v2361
        %v2363 = vsel %vm1797, %v2151, %v2362
        %v2364 = vsel %vm1799, %v2157, %v2363
        %v2365 = vsel %vm1801, %v2163, %v2364
        %v2366 = vsel %vm1789, %v2175, %v2169
        %v2367 = vsel %vm1791, %v2181, %v2366
        %v2368 = vsel %vm1793, %v2187, %v2367
        %v2369 = vsel %vm1795, %v2193, %v2368
        %v2370 = vsel %vm1797, %v2199, %v2369
        %v2371 = vsel %vm1799, %v2205, %v2370
        %v2372 = vsel %vm1801, %v2211, %v2371
        %v2373 = vsel %vm1789, %v2223, %v2217
        %v2374 = vsel %vm1791, %v2229, %v2373
        %v2375 = vsel %vm1793, %v2235, %v2374
        %v2376 = vsel %vm1795, %v2241, %v2375
        %v2377 = vsel %vm1797, %v2247, %v2376
        %v2378 = vsel %vm1799, %v2253, %v2377
        %v2379 = vsel %vm1801, %v2259, %v2378
        %2388 = vmax.xlane.f32.xlu0 %v2330
        %v2389 = vpop.xlane.xlu0 %2388
        %2390 = vmax.xlane.f32.xlu0 %v2337
        %v2391 = vpop.xlane.xlu0 %2390
        %2392 = vmax.xlane.f32.xlu0 %v2344
        %v2393 = vpop.xlane.xlu0 %2392
        %2394 = vmax.xlane.f32.xlu0 %v2351
        %v2395 = vpop.xlane.xlu0 %2394
        %2396 = vmax.xlane.f32.xlu0 %v2358
        %v2397 = vpop.xlane.xlu0 %2396
        %2398 = vmax.xlane.f32.xlu0 %v2365
        %v2399 = vpop.xlane.xlu0 %2398
        %2400 = vmax.xlane.f32.xlu0 %v2372
        %v2401 = vpop.xlane.xlu0 %2400
        %2402 = vmax.xlane.f32.xlu0 %v2379
        %v2403 = vpop.xlane.xlu0 %2402
        %v2404 = vmul.f32 %v1861, 0.0009765625
        %v2405 = vmul.f32 %v1863, 0.0009765625
        %v2406 = vmul.f32 %v1865, 0.0009765625
        %v2407 = vmul.f32 %v1867, 0.0009765625
        %v2408 = vmul.f32 %v1869, 0.0009765625
        %v2409 = vmul.f32 %v1871, 0.0009765625
        %v2410 = vmul.f32 %v1873, 0.0009765625
        %v2411 = vmul.f32 %v1875, 0.0009765625
        %vm2412 = vcmask 7168
        %v2413 = vsel %vm2412, %v2404, %v2389
        %v2414 = vsel %vm2412, %v2405, %v2391
        %v2415 = vsel %vm2412, %v2406, %v2393
        %v2416 = vsel %vm2412, %v2407, %v2395
        %v2417 = vsel %vm2412, %v2408, %v2397
        %v2418 = vsel %vm2412, %v2409, %v2399
        %v2419 = vsel %vm2412, %v2410, %v2401
        %v2420 = vsel %vm2412, %v2411, %v2403
        %v2421 = vld [vmem:[%s1] sm:$0xf]
        %vm2422 = vcmask 523264
        %v2424 = vsel %vm2422, %v2421, 0
        %2426 = vmatprep.subr.mxu0 0.0
        %2427 = vmatpush1.msra.mxu0 0.0
        %2428 = vmatprep.subr.mxu0 0.0
        %2429 = vmatpush1.msra.mxu0 0.0
        %2430 = vmatprep.subr.mxu0 0.0
        %2431 = vmatpush1.msra.mxu0 0.0
        %2432 = vmatprep.subr.mxu0 0.0
        %2433 = vmatpush1.msra.mxu0 0.0
        %2434 = vmatprep.subr.mxu0 0.0
        %2435 = vmatpush1.msra.mxu0 0.0
        %2436 = vmatprep.subr.mxu0 0.0
        %2437 = vmatpush1.msra.mxu0 0.0
        %2438 = vmatprep.subr.mxu0 0.0
        %2439 = vmatpush1.msra.mxu0 0.0
        %2440 = vmatprep.subr.mxu0 0.0
        %2441 = vmatpush1.msra.mxu0 0.0
        %2442 = vmatprep.subr.mxu0 0.0
        %2443 = vmatpush1.msra.mxu0 %v2420
        %2444 = vmatprep.subr.mxu0 0.0
        %2445 = vmatpush1.msra.mxu0 %v2419
        %2446 = vmatprep.subr.mxu0 0.0
        %2447 = vmatpush1.msra.mxu0 %v2418
        %2448 = vmatprep.subr.mxu0 0.0
        %2449 = vmatpush1.msra.mxu0 %v2417
        %2450 = vmatprep.subr.mxu0 0.0
        %2451 = vmatpush1.msra.mxu0 %v2416
        %2452 = vmatprep.subr.mxu0 0.0
        %2453 = vmatpush1.msra.mxu0 %v2415
        %2454 = vmatprep.subr.mxu0 0.0
        %2455 = vmatpush1.msra.mxu0 %v2414
        %2456 = vmatprep.subr.mxu0 0.0
        %2457 = vmatpush1.msra.mxu0 %v2413
        %2458 = vmatprep.subr.mxu0 0.0
        %2459 = vmatpush2.msra.mxu0 0.0
        %2460 = vmatprep.subr.mxu0 0.0
        %2461 = vmatpush2.msra.mxu0 0.0
        %2462 = vmatprep.subr.mxu0 0.0
        %2463 = vmatpush2.msra.mxu0 0.0
        %2464 = vmatprep.subr.mxu0 0.0
        %2465 = vmatpush2.msra.mxu0 0.0
        %2466 = vmatprep.subr.mxu0 0.0
        %2467 = vmatpush2.msra.mxu0 0.0
        %2468 = vmatprep.subr.mxu0 0.0
        %2469 = vmatpush2.msra.mxu0 0.0
        %2470 = vmatprep.subr.mxu0 0.0
        %2471 = vmatpush2.msra.mxu0 0.0
        %2472 = vmatprep.subr.mxu0 0.0
        %2473 = vmatpush2.msra.mxu0 0.0
        %2474 = vmatprep.subr.mxu0 0.0
        %2475 = vmatpush2.msra.mxu0 0.0
        %2476 = vmatprep.subr.mxu0 0.0
        %2477 = vmatpush2.msra.mxu0 0.0
        %2478 = vmatprep.subr.mxu0 0.0
        %2479 = vmatpush2.msra.mxu0 0.0
        %2480 = vmatprep.subr.mxu0 0.0
        %2481 = vmatpush2.msra.mxu0 0.0
        %2482 = vmatprep.subr.mxu0 0.0
        %2483 = vmatpush2.msra.mxu0 0.0
        %2484 = vmatprep.subr.mxu0 0.0
        %2485 = vmatpush2.msra.mxu0 0.0
        %2486 = vmatprep.subr.mxu0 0.0
        %2487 = vmatpush2.msra.mxu0 0.0
        %2488 = vmatprep.subr.mxu0 0.0
        %2489 = vmatpush2.msra.mxu0 0.0
        %2490 = vmatprep.mubr.f32.mxu0 0.0
        %2491 = vmatmul.mubr.f32.gmra.mxu0 %v2424
        %v2492 = vpop.f32.mrf.mxu0
        %v2493 = vadd.f32 0.0, %v2492
        %v2494 = vpop.f32.mrf.mxu0
        %2495 = vdwg.mxu0
        %v2496 = vmax.f32 %v2493, 0.0
        %v2497 = vld [vmem:[%s2] sm:$0xff]
        %v2498 = vld [vmem:[%s2 + $0x8] sm:$0xff]
        %v2499 = vld [vmem:[%s2 + $0x10] sm:$0xff]
        %v2500 = vld [vmem:[%s2 + $0x18] sm:$0xff]
        %v2501 = vld [vmem:[%s2 + $0x20] sm:$0xff]
        %v2502 = vld [vmem:[%s2 + $0x28] sm:$0xff]
        %v2503 = vld [vmem:[%s2 + $0x30] sm:$0xff]
        %v2504 = vld [vmem:[%s2 + $0x38] sm:$0xff]
        %vm2505 = vcmask 31744
        %v2507 = vsel %vm2505, %v2497, 0
        %v2510 = vsel %vm2505, %v2498, 0
        %v2513 = vsel %vm2505, %v2499, 0
        %v2516 = vsel %vm2505, %v2500, 0
        %v2519 = vsel %vm2505, %v2501, 0
        %v2522 = vsel %vm2505, %v2502, 0
        %v2525 = vsel %vm2505, %v2503, 0
        %v2528 = vsel %vm2505, %v2504, 0
        %vm2530 = vcmask 1043456
        %v2532 = vsel %vm2530, %v2496, 0
        %2534 = vmatprep.subr.mxu0 0.0
        %2535 = vmatpush1.msra.mxu0 0.0
        %2536 = vmatprep.subr.mxu0 0.0
        %2537 = vmatpush1.msra.mxu0 0.0
        %2538 = vmatprep.subr.mxu0 0.0
        %2539 = vmatpush1.msra.mxu0 0.0
        %2540 = vmatprep.subr.mxu0 0.0
        %2541 = vmatpush1.msra.mxu0 0.0
        %2542 = vmatprep.subr.mxu0 0.0
        %2543 = vmatpush1.msra.mxu0 0.0
        %2544 = vmatprep.subr.mxu0 0.0
        %2545 = vmatpush1.msra.mxu0 0.0
        %2546 = vmatprep.subr.mxu0 0.0
        %2547 = vmatpush1.msra.mxu0 0.0
        %2548 = vmatprep.subr.mxu0 0.0
        %2549 = vmatpush1.msra.mxu0 0.0
        %2550 = vmatprep.subr.mxu0 0.0
        %2551 = vmatpush1.msra.mxu0 0.0
        %2552 = vmatprep.subr.mxu0 0.0
        %2553 = vmatpush1.msra.mxu0 0.0
        %2554 = vmatprep.subr.mxu0 0.0
        %2555 = vmatpush1.msra.mxu0 0.0
        %2556 = vmatprep.subr.mxu0 0.0
        %2557 = vmatpush1.msra.mxu0 0.0
        %2558 = vmatprep.subr.mxu0 0.0
        %2559 = vmatpush1.msra.mxu0 0.0
        %2560 = vmatprep.subr.mxu0 0.0
        %2561 = vmatpush1.msra.mxu0 0.0
        %2562 = vmatprep.subr.mxu0 0.0
        %2563 = vmatpush1.msra.mxu0 0.0
        %2564 = vmatprep.subr.mxu0 0.0
        %2565 = vmatpush1.msra.mxu0 %v2532
        %2566 = vmatprep.subr.mxu0 0.0
        %2567 = vmatpush2.msra.mxu0 0.0
        %2568 = vmatprep.subr.mxu0 0.0
        %2569 = vmatpush2.msra.mxu0 0.0
        %2570 = vmatprep.subr.mxu0 0.0
        %2571 = vmatpush2.msra.mxu0 0.0
        %2572 = vmatprep.subr.mxu0 0.0
        %2573 = vmatpush2.msra.mxu0 0.0
        %2574 = vmatprep.subr.mxu0 0.0
        %2575 = vmatpush2.msra.mxu0 0.0
        %2576 = vmatprep.subr.mxu0 0.0
        %2577 = vmatpush2.msra.mxu0 0.0
        %2578 = vmatprep.subr.mxu0 0.0
        %2579 = vmatpush2.msra.mxu0 0.0
        %2580 = vmatprep.subr.mxu0 0.0
        %2581 = vmatpush2.msra.mxu0 0.0
        %2582 = vmatprep.subr.mxu0 0.0
        %2583 = vmatpush2.msra.mxu0 0.0
        %2584 = vmatprep.subr.mxu0 0.0
        %2585 = vmatpush2.msra.mxu0 0.0
        %2586 = vmatprep.subr.mxu0 0.0
        %2587 = vmatpush2.msra.mxu0 0.0
        %2588 = vmatprep.subr.mxu0 0.0
        %2589 = vmatpush2.msra.mxu0 0.0
        %2590 = vmatprep.subr.mxu0 0.0
        %2591 = vmatpush2.msra.mxu0 0.0
        %2592 = vmatprep.subr.mxu0 0.0
        %2593 = vmatpush2.msra.mxu0 0.0
        %2594 = vmatprep.subr.mxu0 0.0
        %2595 = vmatpush2.msra.mxu0 0.0
        %2596 = vmatprep.subr.mxu0 0.0
        %2597 = vmatpush2.msra.mxu0 0.0
        %2598 = vmatprep.mubr.f32.mxu0 0.0
        %2599 = vmatmul.mubr.f32.gmra.mxu0 %v2507
        %v2600 = vpop.f32.mrf.mxu0
        %v2601 = vadd.f32 0.0, %v2600
        %v2602 = vpop.f32.mrf.mxu0
        %2603 = vmatprep.mubr.f32.mxu0 0.0
        %2604 = vmatmul.mubr.f32.gmra.mxu0 %v2510
        %v2605 = vpop.f32.mrf.mxu0
        %v2606 = vadd.f32 0.0, %v2605
        %v2607 = vpop.f32.mrf.mxu0
        %2608 = vmatprep.mubr.f32.mxu0 0.0
        %2609 = vmatmul.mubr.f32.gmra.mxu0 %v2513
        %v2610 = vpop.f32.mrf.mxu0
        %v2611 = vadd.f32 0.0, %v2610
        %v2612 = vpop.f32.mrf.mxu0
        %2613 = vmatprep.mubr.f32.mxu0 0.0
        %2614 = vmatmul.mubr.f32.gmra.mxu0 %v2516
        %v2615 = vpop.f32.mrf.mxu0
        %v2616 = vadd.f32 0.0, %v2615
        %v2617 = vpop.f32.mrf.mxu0
        %2618 = vmatprep.mubr.f32.mxu0 0.0
        %2619 = vmatmul.mubr.f32.gmra.mxu0 %v2519
        %v2620 = vpop.f32.mrf.mxu0
        %v2621 = vadd.f32 0.0, %v2620
        %v2622 = vpop.f32.mrf.mxu0
        %2623 = vmatprep.mubr.f32.mxu0 0.0
        %2624 = vmatmul.mubr.f32.gmra.mxu0 %v2522
        %v2625 = vpop.f32.mrf.mxu0
        %v2626 = vadd.f32 0.0, %v2625
        %v2627 = vpop.f32.mrf.mxu0
        %2628 = vmatprep.mubr.f32.mxu0 0.0
        %2629 = vmatmul.mubr.f32.gmra.mxu0 %v2525
        %v2630 = vpop.f32.mrf.mxu0
        %v2631 = vadd.f32 0.0, %v2630
        %v2632 = vpop.f32.mrf.mxu0
        %2633 = vmatprep.mubr.f32.mxu0 0.0
        %2634 = vmatmul.mubr.f32.gmra.mxu0 %v2528
        %v2635 = vpop.f32.mrf.mxu0
        %v2636 = vadd.f32 0.0, %v2635
        %v2637 = vpop.f32.mrf.mxu0
        %2638 = vdwg.mxu0
        %2647 = vrot.lane.b32.xlu0 %v2601, 127
        %v2648 = vpop.permute.xlu0 %2647
        %2649 = vrot.lane.b32.xlu0 %v2606, 127
        %v2650 = vpop.permute.xlu0 %2649
        %2651 = vrot.lane.b32.xlu0 %v2611, 127
        %v2652 = vpop.permute.xlu0 %2651
        %2653 = vrot.lane.b32.xlu0 %v2616, 127
        %v2654 = vpop.permute.xlu0 %2653
        %2655 = vrot.lane.b32.xlu0 %v2621, 127
        %v2656 = vpop.permute.xlu0 %2655
        %2657 = vrot.lane.b32.xlu0 %v2626, 127
        %v2658 = vpop.permute.xlu0 %2657
        %2659 = vrot.lane.b32.xlu0 %v2631, 127
        %v2660 = vpop.permute.xlu0 %2659
        %2661 = vrot.lane.b32.xlu0 %v2636, 127
        %v2662 = vpop.permute.xlu0 %2661
        %v2671 = vadd.f32 %v2601, %v2648
        %v2672 = vadd.f32 %v2606, %v2650
        %v2673 = vadd.f32 %v2611, %v2652
        %v2674 = vadd.f32 %v2616, %v2654
        %v2675 = vadd.f32 %v2621, %v2656
        %v2676 = vadd.f32 %v2626, %v2658
        %v2677 = vadd.f32 %v2631, %v2660
        %v2678 = vadd.f32 %v2636, %v2662
        %v2679 = vxor.u32 %v2671, 2147483648
        %v2680 = vxor.u32 %v2672, 2147483648
        %v2681 = vxor.u32 %v2673, 2147483648
        %v2682 = vxor.u32 %v2674, 2147483648
        %v2683 = vxor.u32 %v2675, 2147483648
        %v2684 = vxor.u32 %v2676, 2147483648
        %v2685 = vxor.u32 %v2677, 2147483648
        %v2686 = vxor.u32 %v2678, 2147483648
        %v2687 = vmul.f32 %v2679, 1.442695
        %v2688 = vpow.pop %v2687
        %v2689 = vmul.f32 %v2680, 1.442695
        %v2690 = vpow.pop %v2689
        %v2691 = vmul.f32 %v2681, 1.442695
        %v2692 = vpow.pop %v2691
        %v2693 = vmul.f32 %v2682, 1.442695
        %v2694 = vpow.pop %v2693
        %v2695 = vmul.f32 %v2683, 1.442695
        %v2696 = vpow.pop %v2695
        %v2697 = vmul.f32 %v2684, 1.442695
        %v2698 = vpow.pop %v2697
        %v2699 = vmul.f32 %v2685, 1.442695
        %v2700 = vpow.pop %v2699
        %v2701 = vmul.f32 %v2686, 1.442695
        %v2702 = vpow.pop %v2701
        %v2703 = vadd.f32 %v2688, 1.0
        %v2704 = vadd.f32 %v2690, 1.0
        %v2705 = vadd.f32 %v2692, 1.0
        %v2706 = vadd.f32 %v2694, 1.0
        %v2707 = vadd.f32 %v2696, 1.0
        %v2708 = vadd.f32 %v2698, 1.0
        %v2709 = vadd.f32 %v2700, 1.0
        %v2710 = vadd.f32 %v2702, 1.0
        %v2711 = vrcp.pop %v2703
        %v2712 = vmul.f32 1.0, %v2711
        %v2713 = vrcp.pop %v2704
        %v2714 = vmul.f32 1.0, %v2713
        %v2715 = vrcp.pop %v2705
        %v2716 = vmul.f32 1.0, %v2715
        %v2717 = vrcp.pop %v2706
        %v2718 = vmul.f32 1.0, %v2717
        %v2719 = vrcp.pop %v2707
        %v2720 = vmul.f32 1.0, %v2719
        %v2721 = vrcp.pop %v2708
        %v2722 = vmul.f32 1.0, %v2721
        %v2723 = vrcp.pop %v2709
        %v2724 = vmul.f32 1.0, %v2723
        %v2725 = vrcp.pop %v2710
        %v2726 = vmul.f32 1.0, %v2725
        %2728 = vset.pattern.permute.xlu0 0
        %2729 = vperm.xlu0 %2728, %v2712
        %v2730 = vpop.permute.xlu0 %2729
        %2733 = vset.pattern.permute.xlu0 0
        %2734 = vperm.xlu0 %2733, %v2714
        %v2735 = vpop.permute.xlu0 %2734
        %2738 = vset.pattern.permute.xlu0 0
        %2739 = vperm.xlu0 %2738, %v2716
        %v2740 = vpop.permute.xlu0 %2739
        %2743 = vset.pattern.permute.xlu0 0
        %2744 = vperm.xlu0 %2743, %v2718
        %v2745 = vpop.permute.xlu0 %2744
        %2748 = vset.pattern.permute.xlu0 0
        %2749 = vperm.xlu0 %2748, %v2720
        %v2750 = vpop.permute.xlu0 %2749
        %2753 = vset.pattern.permute.xlu0 0
        %2754 = vperm.xlu0 %2753, %v2722
        %v2755 = vpop.permute.xlu0 %2754
        %2758 = vset.pattern.permute.xlu0 0
        %2759 = vperm.xlu0 %2758, %v2724
        %v2760 = vpop.permute.xlu0 %2759
        %2763 = vset.pattern.permute.xlu0 0
        %2764 = vperm.xlu0 %2763, %v2726
        %v2765 = vpop.permute.xlu0 %2764
        %v2767 = vmul.f32 %v189, %v2730
        %v2768 = vmul.f32 %v190, %v2730
        %v2769 = vmul.f32 %v191, %v2730
        %v2770 = vmul.f32 %v192, %v2730
        %v2771 = vmul.f32 %v193, %v2730
        %v2772 = vmul.f32 %v194, %v2730
        %v2773 = vmul.f32 %v195, %v2730
        %v2774 = vmul.f32 %v196, %v2730
        %v2775 = vmul.f32 %v197, %v2735
        %v2776 = vmul.f32 %v198, %v2735
        %v2777 = vmul.f32 %v199, %v2735
        %v2778 = vmul.f32 %v200, %v2735
        %v2779 = vmul.f32 %v201, %v2735
        %v2780 = vmul.f32 %v202, %v2735
        %v2781 = vmul.f32 %v203, %v2735
        %v2782 = vmul.f32 %v204, %v2735
        %v2783 = vmul.f32 %v205, %v2740
        %v2784 = vmul.f32 %v206, %v2740
        %v2785 = vmul.f32 %v207, %v2740
        %v2786 = vmul.f32 %v208, %v2740
        %v2787 = vmul.f32 %v209, %v2740
        %v2788 = vmul.f32 %v210, %v2740
        %v2789 = vmul.f32 %v211, %v2740
        %v2790 = vmul.f32 %v212, %v2740
        %v2791 = vmul.f32 %v213, %v2745
        %v2792 = vmul.f32 %v214, %v2745
        %v2793 = vmul.f32 %v215, %v2745
        %v2794 = vmul.f32 %v216, %v2745
        %v2795 = vmul.f32 %v217, %v2745
        %v2796 = vmul.f32 %v218, %v2745
        %v2797 = vmul.f32 %v219, %v2745
        %v2798 = vmul.f32 %v220, %v2745
        %v2799 = vmul.f32 %v221, %v2750
        %v2800 = vmul.f32 %v222, %v2750
        %v2801 = vmul.f32 %v223, %v2750
        %v2802 = vmul.f32 %v224, %v2750
        %v2803 = vmul.f32 %v225, %v2750
        %v2804 = vmul.f32 %v226, %v2750
        %v2805 = vmul.f32 %v227, %v2750
        %v2806 = vmul.f32 %v228, %v2750
        %v2807 = vmul.f32 %v229, %v2755
        %v2808 = vmul.f32 %v230, %v2755
        %v2809 = vmul.f32 %v231, %v2755
        %v2810 = vmul.f32 %v232, %v2755
        %v2811 = vmul.f32 %v233, %v2755
        %v2812 = vmul.f32 %v234, %v2755
        %v2813 = vmul.f32 %v235, %v2755
        %v2814 = vmul.f32 %v236, %v2755
        %v2815 = vmul.f32 %v237, %v2760
        %v2816 = vmul.f32 %v238, %v2760
        %v2817 = vmul.f32 %v239, %v2760
        %v2818 = vmul.f32 %v240, %v2760
        %v2819 = vmul.f32 %v241, %v2760
        %v2820 = vmul.f32 %v242, %v2760
        %v2821 = vmul.f32 %v243, %v2760
        %v2822 = vmul.f32 %v244, %v2760
        %v2823 = vmul.f32 %v245, %v2765
        %v2824 = vmul.f32 %v246, %v2765
        %v2825 = vmul.f32 %v247, %v2765
        %v2826 = vmul.f32 %v248, %v2765
        %v2827 = vmul.f32 %v249, %v2765
        %v2828 = vmul.f32 %v250, %v2765
        %v2829 = vmul.f32 %v251, %v2765
        %v2830 = vmul.f32 %v252, %v2765
        %2831 = vst [vmem:[%s188] sm:$0xff] %v2767
        %2832 = vst [vmem:[%s188 + $0x8] sm:$0xff] %v2768
        %2833 = vst [vmem:[%s188 + $0x10] sm:$0xff] %v2769
        %2834 = vst [vmem:[%s188 + $0x18] sm:$0xff] %v2770
        %2835 = vst [vmem:[%s188 + $0x20] sm:$0xff] %v2771
        %2836 = vst [vmem:[%s188 + $0x28] sm:$0xff] %v2772
        %2837 = vst [vmem:[%s188 + $0x30] sm:$0xff] %v2773
        %2838 = vst [vmem:[%s188 + $0x38] sm:$0xff] %v2774
        %2839 = vst [vmem:[%s188 + $0x40] sm:$0xff] %v2775
        %2840 = vst [vmem:[%s188 + $0x48] sm:$0xff] %v2776
        %2841 = vst [vmem:[%s188 + $0x50] sm:$0xff] %v2777
        %2842 = vst [vmem:[%s188 + $0x58] sm:$0xff] %v2778
        %2843 = vst [vmem:[%s188 + $0x60] sm:$0xff] %v2779
        %2844 = vst [vmem:[%s188 + $0x68] sm:$0xff] %v2780
        %2845 = vst [vmem:[%s188 + $0x70] sm:$0xff] %v2781
        %2846 = vst [vmem:[%s188 + $0x78] sm:$0xff] %v2782
        %2847 = vst [vmem:[%s188 + $0x80] sm:$0xff] %v2783
        %2848 = vst [vmem:[%s188 + $0x88] sm:$0xff] %v2784
        %2849 = vst [vmem:[%s188 + $0x90] sm:$0xff] %v2785
        %2850 = vst [vmem:[%s188 + $0x98] sm:$0xff] %v2786
        %2851 = vst [vmem:[%s188 + $0xa0] sm:$0xff] %v2787
        %2852 = vst [vmem:[%s188 + $0xa8] sm:$0xff] %v2788
        %2853 = vst [vmem:[%s188 + $0xb0] sm:$0xff] %v2789
        %2854 = vst [vmem:[%s188 + $0xb8] sm:$0xff] %v2790
        %2855 = vst [vmem:[%s188 + $0xc0] sm:$0xff] %v2791
        %2856 = vst [vmem:[%s188 + $0xc8] sm:$0xff] %v2792
        %2857 = vst [vmem:[%s188 + $0xd0] sm:$0xff] %v2793
        %2858 = vst [vmem:[%s188 + $0xd8] sm:$0xff] %v2794
        %2859 = vst [vmem:[%s188 + $0xe0] sm:$0xff] %v2795
        %2860 = vst [vmem:[%s188 + $0xe8] sm:$0xff] %v2796
        %2861 = vst [vmem:[%s188 + $0xf0] sm:$0xff] %v2797
        %2862 = vst [vmem:[%s188 + $0xf8] sm:$0xff] %v2798
        %2863 = vst [vmem:[%s188 + $0x100] sm:$0xff] %v2799
        %2864 = vst [vmem:[%s188 + $0x108] sm:$0xff] %v2800
        %2865 = vst [vmem:[%s188 + $0x110] sm:$0xff] %v2801
        %2866 = vst [vmem:[%s188 + $0x118] sm:$0xff] %v2802
        %2867 = vst [vmem:[%s188 + $0x120] sm:$0xff] %v2803
        %2868 = vst [vmem:[%s188 + $0x128] sm:$0xff] %v2804
        %2869 = vst [vmem:[%s188 + $0x130] sm:$0xff] %v2805
        %2870 = vst [vmem:[%s188 + $0x138] sm:$0xff] %v2806
        %2871 = vst [vmem:[%s188 + $0x140] sm:$0xff] %v2807
        %2872 = vst [vmem:[%s188 + $0x148] sm:$0xff] %v2808
        %2873 = vst [vmem:[%s188 + $0x150] sm:$0xff] %v2809
        %2874 = vst [vmem:[%s188 + $0x158] sm:$0xff] %v2810
        %2875 = vst [vmem:[%s188 + $0x160] sm:$0xff] %v2811
        %2876 = vst [vmem:[%s188 + $0x168] sm:$0xff] %v2812
        %2877 = vst [vmem:[%s188 + $0x170] sm:$0xff] %v2813
        %2878 = vst [vmem:[%s188 + $0x178] sm:$0xff] %v2814
        %2879 = vst [vmem:[%s188 + $0x180] sm:$0xff] %v2815
        %2880 = vst [vmem:[%s188 + $0x188] sm:$0xff] %v2816
        %2881 = vst [vmem:[%s188 + $0x190] sm:$0xff] %v2817
        %2882 = vst [vmem:[%s188 + $0x198] sm:$0xff] %v2818
        %2883 = vst [vmem:[%s188 + $0x1a0] sm:$0xff] %v2819
        %2884 = vst [vmem:[%s188 + $0x1a8] sm:$0xff] %v2820
        %2885 = vst [vmem:[%s188 + $0x1b0] sm:$0xff] %v2821
        %2886 = vst [vmem:[%s188 + $0x1b8] sm:$0xff] %v2822
        %2887 = vst [vmem:[%s188 + $0x1c0] sm:$0xff] %v2823
        %2888 = vst [vmem:[%s188 + $0x1c8] sm:$0xff] %v2824
        %2889 = vst [vmem:[%s188 + $0x1d0] sm:$0xff] %v2825
        %2890 = vst [vmem:[%s188 + $0x1d8] sm:$0xff] %v2826
        %2891 = vst [vmem:[%s188 + $0x1e0] sm:$0xff] %v2827
        %2892 = vst [vmem:[%s188 + $0x1e8] sm:$0xff] %v2828
        %2893 = vst [vmem:[%s188 + $0x1f0] sm:$0xff] %v2829
        %2894 = vst [vmem:[%s188 + $0x1f8] sm:$0xff] %v2830
        %s2895 = sand.u32 %s96, 1
        %s2896 = scalar_lea.sflag [#allocation4], %s2895
        %s2897 = sand.u32 %s96, 1
        %s2898 = smul.addr %s2897, 512
        %s2899 = scalar_lea.vmem [#allocation5], %s2898
        // Predicated region
        $region37: #{tpu_custom_call.1} parent=31 // pred_check
          %p2900 = pneg %p106
        $region38: #{tpu_custom_call.1} parent=31 // pred_check_branch
          %2902 = sbr.rel (%p2900) target = $region40
        $region39: #{tpu_custom_call.1} parent=31 // pred_region
          %s2904 = ssub.s32 8192, 8192
          %2905 = vsyncadd %s2896, %s2904
          %s2906 = smul.addr %s20, 64
          %s2907 = smul.addr %s2906, 128
          %s2908 = scalar_lea.hbm %s3, %s2907
          %s2909 = sshll.u32 %s2899, 4
          %s2910 = int_to_ptr.vmem [resolvable:$true] %s2909
          %2915 = dma.vmem_to_hbm [thread:$0]  %s2910, 8192, %s2908, %s2896, 1024, 1024, 64
        $region40: #{tpu_custom_call.1} parent=31 // pred_fallthru
          _
      $region32: #{tpu_custom_call.1} parent=5 // pred_fallthru
        _
      %p2916 = scmp.le.s32.totalorder 2, %s15
      // Predicated region
      $region41: #{tpu_custom_call.1} parent=5 // pred_check
        %p2917 = pneg %p2916
      $region42: #{tpu_custom_call.1} parent=5 // pred_check_branch
        %2919 = sbr.rel (%p2917) target = $region44
      $region43: #{tpu_custom_call.1} parent=5 // pred_region
        %s2920 = ssub.s32 %s15, 2
        // Predicated region
        $region45: #{tpu_custom_call.1} parent=43 // pred_check
          %p2921 = pneg %p112
        $region46: #{tpu_custom_call.1} parent=43 // pred_check_branch
          %2923 = sbr.rel (%p2921) target = $region48
        $region47: #{tpu_custom_call.1} parent=43 // pred_region
          %s2924 = sand.u32 %s97, 1
          %s2925 = scalar_lea.sflag [#allocation4], %s2924
          %s2926 = sand.u32 %s97, 1
          %s2927 = smul.addr %s2926, 512
          %s2928 = scalar_lea.vmem [#allocation5], %s2927
          %2929 = dma.done %s2925, 8192
        $region48: #{tpu_custom_call.1} parent=43 // pred_fallthru
          _
      $region44: #{tpu_custom_call.1} parent=5 // pred_fallthru
        _
    $region6: #{tpu_custom_call.1} parent=1 // loop_footer
      %s19 = sadd.s32 1, %s15
    $region7: #{tpu_custom_call.1} parent=1 // loop_footer_branch
      %14 = sbr.rel target = $region3
    $region8: #{tpu_custom_call.1} parent=1 // loop_exit
      _
    %2930 = vsyncpa [#allocation3], 1
    %s2931 = scalar_lea.sflag [#allocation3], 1
    %2932 = vsyncpa %s2931, 1
    %2933 = vsyncpa [#allocation4], 1
    %s2934 = scalar_lea.sflag [#allocation4], 1
    %2935 = vsyncpa %s2934, 1

</llo_original>
